<compile_context>
chip_gen: v7x
topology: tpu7x:2x2x1
jax: 0.10.0
libtpu: 0.0.40
codegen_flags: <defaults>
</compile_context>

<pallas_src>
import functools

import jax
import jax.numpy as jnp
from jax.experimental import pallas as pl
from jax.experimental.pallas import tpu as pltpu

F32 = jnp.float32
BF16 = jnp.bfloat16
BN_EPS = 1e-5
LAYER_CFG = ((64, 3, 1), (128, 4, 2), (256, 23, 2), (512, 3, 2))  # (planes, blocks, stride)

IMAGENET_MEANS = jnp.array([0.485, 0.456, 0.406], dtype=F32)
IMAGENET_STDS = jnp.array([0.229, 0.224, 0.225], dtype=F32)

# 3x3 stride-1 convs with more output pixels per image than this use the
# shifted-window kernel; smaller layers use im2col (full K = 9*C MXU depth,
# no padded-row waste).
_WINDOW_MIN_PIXELS = 64


def _rup(x, m):
    return (x + m - 1) // m * m


# ----------------------------- Pallas kernels -----------------------------

def _mm_bn_act_kernel(a_ref, b_ref, s_ref, c_ref, *rest, act, has_res):
    """One (tm, tn) output tile: act((A @ B) * scale + bias [+ residual]).

    A/B are bf16 MXU operands; accumulation and the folded-BN epilogue are f32.
    K is not tiled (tk == K), so there is no accumulator scratch / revisit loop.
    """
    if has_res:
        r_ref, o_ref = rest
    else:
        (o_ref,) = rest
    y = jnp.dot(a_ref[...], b_ref[...], preferred_element_type=jnp.float32)
    y = y * s_ref[...] + c_ref[...]
    if has_res:
        # TODO(synk): residual is carried in bf16 (previous kernel outputs); an
        # f32 skip path would match PyTorch bit-for-bit at 2x residual DMA cost.
        y = y + r_ref[...].astype(jnp.float32)
    if act:
        y = jnp.maximum(y, 0.0)
    o_ref[...] = y.astype(o_ref.dtype)


def _conv3x3_s1_kernel(xm_ref, x0_ref, xp_ref, w_ref, s_ref, c_ref,
                       o_ref, win_ref, *, wp, tm):
    """3x3 stride-1 conv on a flattened padded-NHWC activation.

    The three x refs are the previous / current / next row-blocks of the
    flattened (B*Hp*Wp, C) activation.  They are assembled into a contiguous
    bf16 window of 3*TM rows so every tap (di, dj) is a constant row shift
    d = (di-1)*Wp + (dj-1) (requires TM >= Wp + 1).  All 9 taps are packed
    along K (K = 9*C) into a single MXU dot.  Epilogue = folded BN + ReLU.
    """
    win_ref[0:tm, :] = xm_ref[...]
    win_ref[tm:2 * tm, :] = x0_ref[...]
    win_ref[2 * tm:3 * tm, :] = xp_ref[...]

    taps = []
    for di in range(3):
        for dj in range(3):
            d = (di - 1) * wp + (dj - 1)
            taps.append(win_ref[tm + d:2 * tm + d, :])
    slab = jnp.concatenate(taps, axis=-1)                       # (TM, 9*C) bf16
    acc = jnp.dot(slab, w_ref[...], preferred_element_type=jnp.float32)

    y = acc * s_ref[...] + c_ref[...]
    o_ref[...] = jnp.maximum(y, 0.0).astype(o_ref.dtype)


# ----------------------------- matmul wrapper ------------------------------

def _pick_tiles(M, N):
    """Tile selection: minimal activation padding, full-K single step, and at
    least two blocks along a 'parallel' axis when the work allows (v7x)."""
    tm = min(512, _rup(M, 16))
    if N <= 128:
        tn = N
    elif N >= 512:
        tn = 256
    else:
        tn = 128
    if _rup(M, tm) // tm == 1 and N // tn == 1:
        if M >= 32:
            tm = _rup(_rup(M, 16) // 2, 16)
        elif N >= 256:
            tn = N // 2
    return tm, tn


def matmul_bn_act(a, w, scale, bias, *, act, residual=None):
    """out = act((a @ w) * scale + bias [+ residual]).

    a:          (M, K) activation (cast to bf16)
    w:          (Kw, N) pre-packed bf16 weight (Kw >= K; extra rows are zero)
    scale/bias: (1, N) f32 folded-BN epilogue
    """
    M, K = a.shape
    Kw, N = w.shape
    if Kw > K:                       # stem weight is K-padded for alignment
        a = jnp.pad(a, ((0, 0), (0, Kw - K)))
        K = Kw
    assert K == w.shape[0]
    assert scale.shape == (1, N) and bias.shape == (1, N)

    tm, tn = _pick_tiles(M, N)
    assert N % tn == 0
    Mp = _rup(M, tm)

    a_p = a.astype(BF16)
    if Mp > M:
        a_p = jnp.pad(a_p, ((0, Mp - M), (0, 0)))

    has_res = residual is not None
    in_specs = [
        pl.BlockSpec((tm, K), lambda i, j: (i, 0)),   # A resident across j (inner)
        pl.BlockSpec((K, tn), lambda i, j: (0, j)),
        pl.BlockSpec((1, tn), lambda i, j: (0, j)),
        pl.BlockSpec((1, tn), lambda i, j: (0, j)),
    ]
    args = [a_p, w, scale, bias]
    if has_res:
        r_p = residual.astype(BF16)
        if Mp > M:
            r_p = jnp.pad(r_p, ((0, Mp - M), (0, 0)))
        in_specs.append(pl.BlockSpec((tm, tn), lambda i, j: (i, j)))
        args.append(r_p)

    out = pl.pallas_call(
        functools.partial(_mm_bn_act_kernel, act=act, has_res=has_res),
        out_shape=jax.ShapeDtypeStruct((Mp, N), BF16),
        grid_spec=pltpu.PrefetchScalarGridSpec(
            num_scalar_prefetch=0,
            grid=(Mp // tm, N // tn),
            in_specs=in_specs,
            out_specs=pl.BlockSpec((tm, tn), lambda i, j: (i, j)),
        ),
        compiler_params=pltpu.CompilerParams(
            dimension_semantics=("parallel", "parallel")),
    )(*args)
    if Mp > M:
        out = out[:M]
    return out


# ----------------------------- conv wrappers -------------------------------

def _im2col(x_nhwc, kh, kw, stride, pad):
    """Patch extraction (used for the 7x7/2 stem and small-spatial / stride-2
    3x3 convs, where the 9x blow-up is tiny)."""
    B, H, W, C = x_nhwc.shape
    if pad:
        x_nhwc = jnp.pad(x_nhwc, ((0, 0), (pad, pad), (pad, pad), (0, 0)))
    OH = (H + 2 * pad - kh) // stride + 1
    OW = (W + 2 * pad - kw) // stride + 1
    cols = []
    for i in range(kh):
        for j in range(kw):
            cols.append(x_nhwc[:, i:i + stride * OH:stride,
                               j:j + stride * OW:stride, :])
    patches = jnp.concatenate(cols, axis=-1)  # (B, OH, OW, kh*kw*C)
    return patches.reshape(B * OH * OW, kh * kw * C), OH, OW


def conv1x1_bn(x_nhwc, p, *, stride=1, act=True, residual=None):
    """1x1 conv + folded BN (+ fused residual add) (+ ReLU).  p["w"]: (C, O)."""
    if stride > 1:
        # TODO(synk): the stride-2 subsample could be folded into the A
        # BlockSpec index_map; it is a tiny XLA gather (3 downsample convs).
        x_nhwc = x_nhwc[:, ::stride, ::stride, :]
    B, H, W, C = x_nhwc.shape
    O = p["w"].shape[-1]
    a = x_nhwc.reshape(B * H * W, C)
    r = None if residual is None else residual.reshape(B * H * W, O)
    out = matmul_bn_act(a, p["w"], p["scale"], p["bias"], act=act, residual=r)
    return out.reshape(B, H, W, O)


def conv3x3_bn_im2col(x_nhwc, p, *, stride):
    """3x3 pad-1 conv + folded BN + ReLU via im2col (small-spatial / stride-2).
    p["w"]: (9*C, O) in (kh, kw, c) row order."""
    B = x_nhwc.shape[0]
    O = p["w"].shape[-1]
    patches, OH, OW = _im2col(x_nhwc.astype(BF16), 3, 3, stride, 1)
    out = matmul_bn_act(patches, p["w"], p["scale"], p["bias"], act=True)
    return out.reshape(B, OH, OW, O)


def conv3x3_s1_bn_relu(x_nhwc, p):
    """3x3 stride-1 pad-1 conv + folded BN + ReLU via the shifted-window kernel.
    p["w"]: (9*C, O) in (kh, kw, c) row order (shared layout with im2col)."""
    B, H, W, C = x_nhwc.shape
    O = p["w"].shape[-1]
    Hp, Wp = H + 2, W + 2
    xpad = jnp.pad(x_nhwc.astype(BF16), ((0, 0), (1, 1), (1, 1), (0, 0)))
    M = B * Hp * Wp

    # Invariant: TM >= Wp + 1 keeps every tap slice inside the 3*TM-row window;
    # the zero image-border rows/cols plus the final interior slice make the
    # cross-row / cross-batch taps land only on positions that are discarded.
    TM = max(_rup(Wp + 1, 16), 128)
    assert TM >= Wp + 1
    TN = O if O <= 256 else 256
    assert O % TN == 0
    Mp = _rup(M, TM)

    x_flat = xpad.reshape(M, C)
    # Prepend/append TM zero rows so prev/next block fetches never go OOB.
    x_flat = jnp.pad(x_flat, ((TM, TM + Mp - M), (0, 0)))

    # TODO(synk): the activation is still DMA'd ~3x (prev/current/next blocks
    # of the same array); a manual pl.ANY + make_async_copy ring would cut
    # that to ~1x at production resolutions.
    out = pl.pallas_call(
        functools.partial(_conv3x3_s1_kernel, wp=Wp, tm=TM),
        out_shape=jax.ShapeDtypeStruct((Mp, O), BF16),
        grid_spec=pltpu.PrefetchScalarGridSpec(
            num_scalar_prefetch=0,
            # j (out-channel tiles) outer, i (spatial tiles) inner: the weight
            # slab block index is constant across i, so it stays VMEM-resident
            # for the whole spatial sweep.
            grid=(O // TN, Mp // TM),
            in_specs=[
                pl.BlockSpec((TM, C), lambda j, i: (i, 0)),      # prev rows
                pl.BlockSpec((TM, C), lambda j, i: (i + 1, 0)),  # current rows
                pl.BlockSpec((TM, C), lambda j, i: (i + 2, 0)),  # next rows
                pl.BlockSpec((9 * C, TN), lambda j, i: (0, j)),
                pl.BlockSpec((1, TN), lambda j, i: (0, j)),
                pl.BlockSpec((1, TN), lambda j, i: (0, j)),
            ],
            out_specs=pl.BlockSpec((TM, TN), lambda j, i: (i, j)),
            scratch_shapes=[pltpu.VMEM((3 * TM, C), BF16)],
        ),
        compiler_params=pltpu.CompilerParams(
            dimension_semantics=("parallel", "parallel")),
    )(x_flat, x_flat, x_flat, p["w"], p["scale"], p["bias"])

    out = out[:M].reshape(B, Hp, Wp, O)
    return out[:, 1:1 + H, 1:1 + W, :]


# ----------------------------- stem / pooling ------------------------------

@jax.jit
def stem_conv(x_nchw, p):
    """NCHW->NHWC + conv1 7x7/2 + BN + ReLU.  ImageNet normalization and BN are
    already folded into the pre-packed stem weight/bias."""
    x = jnp.transpose(x_nchw, (0, 2, 3, 1)).astype(BF16)
    B = x.shape[0]
    patches, OH, OW = _im2col(x, 7, 7, 2, 3)
    out = matmul_bn_act(patches, p["w"], p["scale"], p["bias"], act=True)
    return out.reshape(B, OH, OW, -1)


@jax.jit
def maxpool_3x3_s2_p1(x_nhwc):
    # TODO(synk): single bandwidth-bound stem op; left as fused XLA pairwise
    # maxima over shifted strided views (no materialized 9x stack).
    B, H, W, C = x_nhwc.shape
    xp = jnp.pad(x_nhwc, ((0, 0), (1, 1), (1, 1), (0, 0)),
                 constant_values=-jnp.inf)
    OH = (H + 2 - 3) // 2 + 1
    OW = (W + 2 - 3) // 2 + 1
    out = None
    for i in range(3):
        for j in range(3):
            v = xp[:, i:i + 2 * OH:2, j:j + 2 * OW:2, :]
            out = v if out is None else jnp.maximum(out, v)
    return out


@jax.jit
def _to_nchw_f32(x_nhwc):
    return jnp.transpose(x_nhwc, (0, 3, 1, 2)).astype(F32)


# ----------------------------- parameter init -----------------------------

def _make_conv(key, o, i, kh, kw):
    std = 0.5 * (2.0 / (i * kh * kw)) ** 0.5
    return (jax.random.normal(key, (o, i, kh, kw), F32) * std).astype(F32)


def _make_bn(key, c):
    k1, k2 = jax.random.split(key)
    gamma = jax.random.uniform(k1, (c,), F32, 0.9, 1.1)
    beta = jax.random.normal(k2, (c,), F32) * 0.01
    running_mean = jnp.zeros((c,), F32)
    running_var = jnp.ones((c,), F32)
    scale = gamma / jnp.sqrt(running_var + BN_EPS)
    bias = beta - running_mean * scale
    return scale, bias


def init_resnet101_params(key):
    keys = iter(jax.random.split(key, 512))
    p = {"conv1": _make_conv(next(keys), 64, 3, 7, 7),
         "bn1": _make_bn(next(keys), 64),
         "layers": []}
    in_c = 64
    for planes, nblocks, stride in LAYER_CFG:
        blocks = []
        for bi in range(nblocks):
            s = stride if bi == 0 else 1
            blk = {
                "conv1": _make_conv(next(keys), planes, in_c, 1, 1),
                "bn1": _make_bn(next(keys), planes),
                "conv2": _make_conv(next(keys), planes, planes, 3, 3),
                "bn2": _make_bn(next(keys), planes),
                "conv3": _make_conv(next(keys), planes * 4, planes, 1, 1),
                "bn3": _make_bn(next(keys), planes * 4),
            }
            if s != 1 or in_c != planes * 4:
                blk["down_conv"] = _make_conv(next(keys), planes * 4, in_c, 1, 1)
                blk["down_bn"] = _make_bn(next(keys), planes * 4)
            blocks.append(blk)
            in_c = planes * 4
        p["layers"].append(blocks)
    return p


# ----------------------------- param pre-packing ---------------------------

def _fold_bn(scale, bias):
    return scale.reshape(1, -1).astype(F32), bias.reshape(1, -1).astype(F32)


def _pack_conv1x1(w_oi11, bn):
    o, i = w_oi11.shape[0], w_oi11.shape[1]
    w = jnp.transpose(w_oi11.reshape(o, i), (1, 0)).astype(BF16)       # (I, O)
    s, b = _fold_bn(*bn)
    return {"w": w, "scale": s, "bias": b}


def _pack_conv3x3(w_oikk, bn):
    o, i = w_oikk.shape[0], w_oikk.shape[1]
    w = jnp.transpose(w_oikk, (2, 3, 1, 0)).reshape(9 * i, o).astype(BF16)
    s, b = _fold_bn(*bn)
    return {"w": w, "scale": s, "bias": b}


def _pack_stem(w1, bn):
    # Fold ImageNet mean/std normalization into conv1 (removes Normalize pass):
    #   conv(x_norm, w) = conv(x, w/std) - sum(w*mean/std)
    inv_std = (1.0 / IMAGENET_STDS).reshape(1, 3, 1, 1)
    mean_over_std = (IMAGENET_MEANS / IMAGENET_STDS).reshape(1, 3, 1, 1)
    scale, bias = bn
    w_f = w1 * inv_std
    k = -jnp.sum(w1 * mean_over_std, axis=(1, 2, 3))
    bias_f = bias + scale * k
    w = jnp.transpose(w_f, (2, 3, 1, 0)).reshape(7 * 7 * 3, -1).astype(BF16)
    # Pad K (147 -> 256) once so the MXU contraction dim is lane-aligned.
    w = jnp.pad(w, ((0, _rup(w.shape[0], 128) - w.shape[0]), (0, 0)))
    s, b = _fold_bn(scale, bias_f)
    return {"w": w, "scale": s, "bias": b}


def prepare_params(raw):
    """One-time packing: (K, N) bf16 weights, folded BN scale/bias, stem
    normalization folded in.  Removes all per-call weight layout glue."""
    packed = {"stem": _pack_stem(raw["conv1"], raw["bn1"]), "layers": []}
    for layer in raw["layers"]:
        blocks = []
        for blk in layer:
            pb = {"conv1": _pack_conv1x1(blk["conv1"], blk["bn1"]),
                  "conv2": _pack_conv3x3(blk["conv2"], blk["bn2"]),
                  "conv3": _pack_conv1x1(blk["conv3"], blk["bn3"])}
            if "down_conv" in blk:
                pb["down"] = _pack_conv1x1(blk["down_conv"], blk["down_bn"])
            blocks.append(pb)
        packed["layers"].append(blocks)
    return packed


# ----------------------------- forward pass --------------------------------

@functools.partial(jax.jit, static_argnames=("stride",))
def bottleneck_block(x, blk, stride):
    """Bottleneck (expansion=4), stride on the center 3x3 conv (v1.5)."""
    if "down" in blk:
        identity = conv1x1_bn(x, blk["down"], stride=stride, act=False)
    else:
        identity = x
    out = conv1x1_bn(x, blk["conv1"], act=True)
    H, W = out.shape[1], out.shape[2]
    if stride == 1 and H * W > _WINDOW_MIN_PIXELS:
        out = conv3x3_s1_bn_relu(out, blk["conv2"])
    else:
        out = conv3x3_bn_im2col(out, blk["conv2"], stride=stride)
    # conv3 + BN + fused residual add + ReLU
    return conv1x1_bn(out, blk["conv3"], residual=identity, act=True)


def resnet101_forward(packed, x_nchw):
    assert x_nchw.shape[1] == 3  # Normalize layer requirement
    x = stem_conv(x_nchw, packed["stem"])          # conv1 7x7/2 + BN + ReLU
    x = maxpool_3x3_s2_p1(x)                       # maxpool 3x3/2 pad 1
    for li, (planes, nblocks, stride) in enumerate(LAYER_CFG):
        for bi in range(nblocks):
            s = stride if bi == 0 else 1
            x = bottleneck_block(x, packed["layers"][li][bi], stride=s)
    return _to_nchw_f32(x)                         # fullyConv: no avgpool/fc


# ----------------------------- main ----------------------------------------

if __name__ == "__main__":
    key = jax.random.PRNGKey(0)
    pkey, xkey = jax.random.split(key)
    raw_params = init_resnet101_params(pkey)
    params = prepare_params(raw_params)            # one-time pre-packing
    x = jax.random.uniform(xkey, (2, 3, 64, 64), dtype=F32)  # NCHW image batch

    out = resnet101_forward(params, x)
    out = jax.block_until_ready(out)

    assert out.shape == (2, 2048, 2, 2), out.shape
    assert bool(jnp.all(jnp.isfinite(out)))
    print("KERNEL_OK")
</pallas_src>

<mosaic_0001>
module attributes {stable_mosaic.version = 11 : i64} {
  func.func @_mm_bn_act_kernel(%arg0: i32, %arg1: i32, %arg2: memref<512x256xbf16, #tpu.memory_space<vmem>>, %arg3: memref<256x64xbf16, #tpu.memory_space<vmem>>, %arg4: memref<1x64xf32, #tpu.memory_space<vmem>>, %arg5: memref<1x64xf32, #tpu.memory_space<vmem>>, %arg6: memref<512x64xbf16, #tpu.memory_space<vmem>>) attributes {dimension_semantics = [#tpu.dimension_semantics<parallel>, #tpu.dimension_semantics<parallel>], iteration_bounds = array<i64: 4, 1>, scalar_prefetch = 0 : i64, scratch_operands = 0 : i64, tpu.core_type = #tpu.core_type<tc>, window_params = [{transform_indices = @transform_0, window_bounds = array<i64: 512, 256>}, {transform_indices = @transform_1, window_bounds = array<i64: 256, 64>}, {transform_indices = @transform_2, window_bounds = array<i64: 1, 64>}, {transform_indices = @transform_3, window_bounds = array<i64: 1, 64>}, {transform_indices = @transform_4, window_bounds = array<i64: 512, 64>}]} {
    %c0 = arith.constant 0 : index
    %c0_0 = arith.constant 0 : index
    %0 = vector.load %arg2[%c0, %c0_0] : memref<512x256xbf16, #tpu.memory_space<vmem>>, vector<512x256xbf16>
    %c0_1 = arith.constant 0 : index
    %c0_2 = arith.constant 0 : index
    %1 = vector.load %arg3[%c0_1, %c0_2] : memref<256x64xbf16, #tpu.memory_space<vmem>>, vector<256x64xbf16>
    %cst = arith.constant dense<0.000000e+00> : vector<512x64xf32>
    %2 = tpu.matmul %0, %1, %cst {dimension_numbers = #tpu.dot_dimension_numbers<[1], [0], [0], [1], [0, 0, 1, 1], [], []>} : vector<512x256xbf16>, vector<256x64xbf16>, vector<512x64xf32> -> vector<512x64xf32>
    %c0_3 = arith.constant 0 : index
    %c0_4 = arith.constant 0 : index
    %3 = vector.load %arg4[%c0_3, %c0_4] : memref<1x64xf32, #tpu.memory_space<vmem>>, vector<1x64xf32>
    %4 = vector.broadcast %3 : vector<1x64xf32> to vector<512x64xf32>
    %5 = arith.mulf %2, %4 : vector<512x64xf32>
    %c0_5 = arith.constant 0 : index
    %c0_6 = arith.constant 0 : index
    %6 = vector.load %arg5[%c0_5, %c0_6] : memref<1x64xf32, #tpu.memory_space<vmem>>, vector<1x64xf32>
    %7 = vector.broadcast %6 : vector<1x64xf32> to vector<512x64xf32>
    %8 = arith.addf %5, %7 : vector<512x64xf32>
    %cst_7 = arith.constant 0.000000e+00 : f32
    %9 = vector.broadcast %cst_7 : f32 to vector<512x64xf32>
    %10 = arith.maximumf %8, %9 : vector<512x64xf32>
    %11 = arith.truncf %10 : vector<512x64xf32> to vector<512x64xbf16>
    %c0_8 = arith.constant 0 : index
    %c0_9 = arith.constant 0 : index
    %12 = vector.load %arg6[%c0_8, %c0_9] : memref<512x64xbf16, #tpu.memory_space<vmem>>, vector<512x64xbf16>
    tpu.vector_store %arg6[%c0_8, %c0_9], %11 {strides = array<i32>} : memref<512x64xbf16, #tpu.memory_space<vmem>>, vector<512x64xbf16>,
    return
  }
  func.func @transform_0(%arg0: i32, %arg1: i32) -> (i32, i32) {
    %c0_i32 = arith.constant 0 : i32
    %c0_i32_0 = arith.constant 0 : i32
    return %arg0, %c0_i32 : i32, i32
  }
  func.func @transform_1(%arg0: i32, %arg1: i32) -> (i32, i32) {
    %c0_i32 = arith.constant 0 : i32
    %c0_i32_0 = arith.constant 0 : i32
    return %c0_i32, %arg1 : i32, i32
  }
  func.func @transform_2(%arg0: i32, %arg1: i32) -> (i32, i32) {
    %c0_i32 = arith.constant 0 : i32
    %c0_i32_0 = arith.constant 0 : i32
    return %c0_i32, %arg1 : i32, i32
  }
  func.func @transform_3(%arg0: i32, %arg1: i32) -> (i32, i32) {
    %c0_i32 = arith.constant 0 : i32
    %c0_i32_0 = arith.constant 0 : i32
    return %c0_i32, %arg1 : i32, i32
  }
  func.func @transform_4(%arg0: i32, %arg1: i32) -> (i32, i32) {
    %c0_i32 = arith.constant 0 : i32
    return %arg0, %arg1 : i32, i32
  }
}

</mosaic_0001>

<llo_original>
// kernel: stem_conv.1
$region0: #{stem_conv.1}
  #allocation0 [shape = 'u32[]', space=smem, size = 0x4, offset = 0x4, fixed_abs, tag = 'smem constant byte address 0x4 - core index']
  #allocation1 [shape = 'u32[144,128]{1,0:T(1,128)}', space=vmem, size = 0x12000, scoped, tag = 'internal scratch']
  %s0 = inlined_call_operand.vmem [shape: bf16[2048,256], index: 0, kind: input, shape index: {}]
  %s1 = inlined_call_operand.vmem [shape: bf16[256,64], index: 1, kind: input, shape index: {}]
  %s2 = inlined_call_operand.vmem [shape: f32[1,64], index: 2, kind: input, shape index: {}]
  %s3 = inlined_call_operand.vmem [shape: f32[1,64], index: 3, kind: input, shape index: {}]
  %s4 = inlined_call_operand.hbm [shape: bf16[2048,64], index: 4, kind: output, shape index: {}]
  %s5 = sld [smem:[#allocation0]]
  $region49: #{stem_conv.1} parent=0
    _
  %s7 = ssub.s32 1, %s5
  %s8 = scalar_select 0, %s7, %s5
  $region1: #{stem_conv.1} parent=0
    #allocation2 [shape = 'u8[262144]{0}', space=vmem, size = 0x40000, scoped, tag = 'output window, operand 0']
    #allocation3 [shape = 's32[2]{0}', space=sflag, size = 0x8, scoped, tag = 'scoped memory for stem_conv.1']
    %9 = vsyncpa [#allocation3], 0
    %s10 = scalar_lea.sflag [#allocation3], 1
    %11 = vsyncpa %s10, 0
    loop: start=0, step=1, limit=6
    $region2: #{stem_conv.1} parent=1 // loop_pre_header
      _
    $region3: #{stem_conv.1} parent=1 // loop_header
      %s13 = sphi 0, %s17
      %p14 = scmp.ge.s32.totalorder %s13, 6
      %s20 = sphi 0, %s32
      %s21 = sphi 0, %s28
      %s22 = sphi 0, %s20
      %s23 = sphi 0, %s21
      %s24 = sphi 0, %s22
      %s25 = sphi 0, %s23
      %s35 = sphi 0, %s37
      %s38 = sphi 0, %s35
      %s39 = sphi 0, %s38
      %s55 = sphi 0, %s39
      %s61 = sphi 0, %s63
      %s64 = sphi 0, %s61
      %s65 = sphi 0, %s64
      %s81 = sphi 0, %s65
      %s87 = sphi 0, %s89
      %s90 = sphi 0, %s87
      %s91 = sphi 0, %s90
      %s107 = sphi 0, %s91
      %s113 = sphi 0, %s115
      %s116 = sphi 0, %s113
      %s117 = sphi 0, %s116
      %s133 = sphi 0, %s117
      %s141 = sphi 0, %s143
      %s144 = sphi 0, %s141
      %s145 = sphi 0, %s144
      %s161 = sphi 0, %s145
    $region4: #{stem_conv.1} parent=1 // loop_header_branch
      %16 = sbr.rel (%p14) target = $region8
    $region5: #{stem_conv.1} parent=1 // loop_body
      %s18 = ssub.s32 %s13, 1
      %s19 = ssub.s32 %s13, 2
      %s26 = sadd.s32 1, %s21
      %p27 = scmp.ge.s32.totalorder %s26, 1
      %s28 = scalar_select %p27, 0, %s26
      %s29 = sadd.s32 1, %s20
      %s30 = scalar_select %p27, %s29, %s20
      %p31 = scmp.ge.s32.totalorder %s30, 4
      %s32 = scalar_select %p31, 0, %s30
      %s33 = ssub.s32 %s20, %s32
      %p34 = scmp.eq.s32.totalorder %s33, 0
      %s36 = sadd.s32 %s35, 1
      %s37 = scalar_select %p34, %s35, %s36
      %p40 = pneg %p34
      %p41 = scmp.eq.s32.totalorder %s13, 3
      %p42 = por %p40, %p41
      %p43 = scmp.ne.s32.totalorder %s35, %s38
      %p44 = scmp.eq.s32.totalorder %s13, 0
      %p45 = por %p43, %p44
      %p46 = scmp.ne.s32.totalorder %s35, %s38
      %p47 = scmp.eq.s32.totalorder %s18, 3
      %p48 = por %p46, %p47
      %p49 = scmp.ne.s32.totalorder %s38, %s39
      %p50 = scmp.eq.s32.totalorder %s18, 0
      %p51 = por %p49, %p50
      %p52 = scmp.ne.s32.totalorder %s38, %s39
      %p53 = scmp.eq.s32.totalorder %s19, 3
      %p54 = por %p52, %p53
      %p56 = scmp.ne.s32.totalorder %s39, %s55
      %p57 = scmp.eq.s32.totalorder %s19, 0
      %p58 = por %p56, %p57
      %s59 = ssub.s32 %s21, %s28
      %p60 = scmp.eq.s32.totalorder %s59, 0
      %s62 = sadd.s32 %s61, 1
      %s63 = scalar_select %p60, %s61, %s62
      %p66 = pneg %p60
      %p67 = scmp.eq.s32.totalorder %s13, 3
      %p68 = por %p66, %p67
      %p69 = scmp.ne.s32.totalorder %s61, %s64
      %p70 = scmp.eq.s32.totalorder %s13, 0
      %p71 = por %p69, %p70
      %p72 = scmp.ne.s32.totalorder %s61, %s64
      %p73 = scmp.eq.s32.totalorder %s18, 3
      %p74 = por %p72, %p73
      %p75 = scmp.ne.s32.totalorder %s64, %s65
      %p76 = scmp.eq.s32.totalorder %s18, 0
      %p77 = por %p75, %p76
      %p78 = scmp.ne.s32.totalorder %s64, %s65
      %p79 = scmp.eq.s32.totalorder %s19, 3
      %p80 = por %p78, %p79
      %p82 = scmp.ne.s32.totalorder %s65, %s81
      %p83 = scmp.eq.s32.totalorder %s19, 0
      %p84 = por %p82, %p83
      %s85 = ssub.s32 %s21, %s28
      %p86 = scmp.eq.s32.totalorder %s85, 0
      %s88 = sadd.s32 %s87, 1
      %s89 = scalar_select %p86, %s87, %s88
      %p92 = pneg %p86
      %p93 = scmp.eq.s32.totalorder %s13, 3
      %p94 = por %p92, %p93
      %p95 = scmp.ne.s32.totalorder %s87, %s90
      %p96 = scmp.eq.s32.totalorder %s13, 0
      %p97 = por %p95, %p96
      %p98 = scmp.ne.s32.totalorder %s87, %s90
      %p99 = scmp.eq.s32.totalorder %s18, 3
      %p100 = por %p98, %p99
      %p101 = scmp.ne.s32.totalorder %s90, %s91
      %p102 = scmp.eq.s32.totalorder %s18, 0
      %p103 = por %p101, %p102
      %p104 = scmp.ne.s32.totalorder %s90, %s91
      %p105 = scmp.eq.s32.totalorder %s19, 3
      %p106 = por %p104, %p105
      %p108 = scmp.ne.s32.totalorder %s91, %s107
      %p109 = scmp.eq.s32.totalorder %s19, 0
      %p110 = por %p108, %p109
      %s111 = ssub.s32 %s21, %s28
      %p112 = scmp.eq.s32.totalorder %s111, 0
      %s114 = sadd.s32 %s113, 1
      %s115 = scalar_select %p112, %s113, %s114
      %p118 = pneg %p112
      %p119 = scmp.eq.s32.totalorder %s13, 3
      %p120 = por %p118, %p119
      %p121 = scmp.ne.s32.totalorder %s113, %s116
      %p122 = scmp.eq.s32.totalorder %s13, 0
      %p123 = por %p121, %p122
      %p124 = scmp.ne.s32.totalorder %s113, %s116
      %p125 = scmp.eq.s32.totalorder %s18, 3
      %p126 = por %p124, %p125
      %p127 = scmp.ne.s32.totalorder %s116, %s117
      %p128 = scmp.eq.s32.totalorder %s18, 0
      %p129 = por %p127, %p128
      %p130 = scmp.ne.s32.totalorder %s116, %s117
      %p131 = scmp.eq.s32.totalorder %s19, 3
      %p132 = por %p130, %p131
      %p134 = scmp.ne.s32.totalorder %s117, %s133
      %p135 = scmp.eq.s32.totalorder %s19, 0
      %p136 = por %p134, %p135
      %s137 = ssub.s32 %s20, %s32
      %s138 = ssub.s32 %s21, %s28
      %s139 = sor.u32 %s137, %s138
      %p140 = scmp.eq.s32.totalorder %s139, 0
      %s142 = sadd.s32 %s141, 1
      %s143 = scalar_select %p140, %s141, %s142
      %p146 = pneg %p140
      %p147 = scmp.eq.s32.totalorder %s13, 3
      %p148 = por %p146, %p147
      %p149 = scmp.ne.s32.totalorder %s141, %s144
      %p150 = scmp.eq.s32.totalorder %s13, 0
      %p151 = por %p149, %p150
      %p152 = scmp.ne.s32.totalorder %s141, %s144
      %p153 = scmp.eq.s32.totalorder %s18, 3
      %p154 = por %p152, %p153
      %p155 = scmp.ne.s32.totalorder %s144, %s145
      %p156 = scmp.eq.s32.totalorder %s18, 0
      %p157 = por %p155, %p156
      %p158 = scmp.ne.s32.totalorder %s144, %s145
      %p159 = scmp.eq.s32.totalorder %s19, 3
      %p160 = por %p158, %p159
      %p162 = scmp.ne.s32.totalorder %s145, %s161
      %p163 = scmp.eq.s32.totalorder %s19, 0
      %p164 = por %p162, %p163
      %p165 = scmp.le.s32.totalorder 1, %s13
      %p166 = scmp.lt.s32.totalorder %s13, 5
      %p167 = pnand %p165, %p166
      %p168 = pneg %p167
      // Predicated region
      $region9: #{stem_conv.1} parent=5 // pred_check
        _
      $region10: #{stem_conv.1} parent=5 // pred_check_branch
        %170 = sbr.rel (%p167) target = $region12
      $region11: #{stem_conv.1} parent=5 // pred_region
        %s171 = ssub.s32 %s13, 1
        // Predicated region
        $region13: #{stem_conv.1} parent=11 // pred_check
          %p172 = pneg %p77
        $region14: #{stem_conv.1} parent=11 // pred_check_branch
          %174 = sbr.rel (%p172) target = $region16
        $region15: #{stem_conv.1} parent=11 // pred_region
          %p175 = scmp.lt.s32.totalorder %s23, 0
          %s176 = scalar_select %p175, %s23, 0
          %s177 = smul.addr %s176, 4
          %s178 = scalar_lea.vmem %s1, %s177
        $region16: #{stem_conv.1} parent=11 // pred_fallthru
          _
        // Predicated region
        $region17: #{stem_conv.1} parent=11 // pred_check
          %p179 = pneg %p103
        $region18: #{stem_conv.1} parent=11 // pred_check_branch
          %181 = sbr.rel (%p179) target = $region20
        $region19: #{stem_conv.1} parent=11 // pred_region
          %p182 = scmp.lt.s32.totalorder %s23, 0
          %s183 = scalar_select %p182, %s23, 0
          %s184 = scalar_lea.vmem %s2, %s183
        $region20: #{stem_conv.1} parent=11 // pred_fallthru
          _
        // Predicated region
        $region21: #{stem_conv.1} parent=11 // pred_check
          %p185 = pneg %p129
        $region22: #{stem_conv.1} parent=11 // pred_check_branch
          %187 = sbr.rel (%p185) target = $region24
        $region23: #{stem_conv.1} parent=11 // pred_region
          %p188 = scmp.lt.s32.totalorder %s23, 0
          %s189 = scalar_select %p188, %s23, 0
          %s190 = scalar_lea.vmem %s3, %s189
        $region24: #{stem_conv.1} parent=11 // pred_fallthru
          _
      $region12: #{stem_conv.1} parent=5 // pred_fallthru
        _
      %p191 = scmp.lt.s32.totalorder %s13, 4
      // Predicated region
      $region25: #{stem_conv.1} parent=5 // pred_check
        %p192 = pneg %p191
      $region26: #{stem_conv.1} parent=5 // pred_check_branch
        %194 = sbr.rel (%p192) target = $region28
      $region27: #{stem_conv.1} parent=5 // pred_region
        // Predicated region
        $region29: #{stem_conv.1} parent=27 // pred_check
          %p195 = pneg %p45
        $region30: #{stem_conv.1} parent=27 // pred_check_branch
          %197 = sbr.rel (%p195) target = $region32
        $region31: #{stem_conv.1} parent=27 // pred_region
          %s198 = smul.u32 64, %s20
          %p199 = scmp.lt.s32.totalorder %s198, 255
          %s200 = scalar_select %p199, %s198, 255
          %s201 = smul.addr %s200, 2
          %s202 = smul.addr %s201, 4
          %s203 = scalar_lea.vmem %s0, %s202
          %s204 = smul.u32 64, %s20
        $region32: #{stem_conv.1} parent=27 // pred_fallthru
          _
      $region28: #{stem_conv.1} parent=5 // pred_fallthru
        _
      %p205 = scmp.le.s32.totalorder 1, %s13
      %p206 = scmp.lt.s32.totalorder %s13, 5
      %p207 = pnand %p205, %p206
      %p208 = pneg %p207
      // Predicated region
      $region33: #{stem_conv.1} parent=5 // pred_check
        _
      $region34: #{stem_conv.1} parent=5 // pred_check_branch
        %210 = sbr.rel (%p207) target = $region36
      $region35: #{stem_conv.1} parent=5 // pred_region
        %s211 = ssub.s32 %s13, 1
        %s212 = smul.u32 64, %s22
        %p213 = scmp.lt.s32.totalorder %s212, 255
        %s214 = scalar_select %p213, %s212, 255
        %s215 = smul.addr %s214, 2
        %s216 = smul.addr %s215, 4
        %s217 = scalar_lea.vmem %s0, %s216
        %p218 = pneg %p51
        %p219 = pneg %p48
        %p220 = scmp.lt.s32.totalorder %s23, 0
        %s221 = scalar_select %p220, %s23, 0
        %s222 = smul.addr %s221, 4
        %s223 = scalar_lea.vmem %s1, %s222
        %p224 = pneg %p77
        %p225 = pneg %p74
        %p226 = scmp.lt.s32.totalorder %s23, 0
        %s227 = scalar_select %p226, %s23, 0
        %s228 = scalar_lea.vmem %s2, %s227
        %p229 = pneg %p103
        %p230 = pneg %p100
        %p231 = scmp.lt.s32.totalorder %s23, 0
        %s232 = scalar_select %p231, %s23, 0
        %s233 = scalar_lea.vmem %s3, %s232
        %p234 = pneg %p129
        %p235 = pneg %p126
        %p236 = pneg %p157
        %p237 = pneg %p154
        %s238 = sand.u32 %s144, 1
        %s239 = scalar_lea.sflag [#allocation3], %s238
        %s240 = sand.u32 %s144, 1
        %s241 = smul.addr %s240, 256
        %s242 = scalar_lea.vmem [#allocation2], %s241
        %s243 = smul.u32 64, %s22
        %p244 = scmp.lt.s32.totalorder %s243, 255
        %s245 = scalar_select %p244, %s243, 255
        %s246 = smul.addr %s245, 2
        %s247 = smul.addr %s246, 4
        %s248 = scalar_lea.vmem %s0, %s247
        %s249 = smul.u32 64, %s22
        %p250 = scmp.lt.s32.totalorder %s23, 0
        %s251 = scalar_select %p250, %s23, 0
        %s252 = smul.addr %s251, 4
        %s253 = scalar_lea.vmem %s1, %s252
        %p254 = scmp.lt.s32.totalorder %s23, 0
        %s255 = scalar_select %p254, %s23, 0
        %s256 = scalar_lea.vmem %s2, %s255
        %p257 = scmp.lt.s32.totalorder %s23, 0
        %s258 = scalar_select %p257, %s23, 0
        %s259 = scalar_lea.vmem %s3, %s258
        %s260 = smul.u32 64, %s22
        %v262 = vld [vmem:[%s248] sm:$0xff]
        %v263 = vld [vmem:[%s248 + $0x8] sm:$0xff]
        %v264 = vld [vmem:[%s248 + $0x10] sm:$0xff]
        %v265 = vld [vmem:[%s248 + $0x18] sm:$0xff]
        %v266 = vld [vmem:[%s248 + $0x20] sm:$0xff]
        %v267 = vld [vmem:[%s248 + $0x28] sm:$0xff]
        %v268 = vld [vmem:[%s248 + $0x30] sm:$0xff]
        %v269 = vld [vmem:[%s248 + $0x38] sm:$0xff]
        %v270 = vld [vmem:[%s248 + $0x40] sm:$0xff]
        %v271 = vld [vmem:[%s248 + $0x48] sm:$0xff]
        %v272 = vld [vmem:[%s248 + $0x50] sm:$0xff]
        %v273 = vld [vmem:[%s248 + $0x58] sm:$0xff]
        %v274 = vld [vmem:[%s248 + $0x60] sm:$0xff]
        %v275 = vld [vmem:[%s248 + $0x68] sm:$0xff]
        %v276 = vld [vmem:[%s248 + $0x70] sm:$0xff]
        %v277 = vld [vmem:[%s248 + $0x78] sm:$0xff]
        %v278 = vld [vmem:[%s248 + $0x80] sm:$0xff]
        %v279 = vld [vmem:[%s248 + $0x88] sm:$0xff]
        %v280 = vld [vmem:[%s248 + $0x90] sm:$0xff]
        %v281 = vld [vmem:[%s248 + $0x98] sm:$0xff]
        %v282 = vld [vmem:[%s248 + $0xa0] sm:$0xff]
        %v283 = vld [vmem:[%s248 + $0xa8] sm:$0xff]
        %v284 = vld [vmem:[%s248 + $0xb0] sm:$0xff]
        %v285 = vld [vmem:[%s248 + $0xb8] sm:$0xff]
        %v286 = vld [vmem:[%s248 + $0xc0] sm:$0xff]
        %v287 = vld [vmem:[%s248 + $0xc8] sm:$0xff]
        %v288 = vld [vmem:[%s248 + $0xd0] sm:$0xff]
        %v289 = vld [vmem:[%s248 + $0xd8] sm:$0xff]
        %v290 = vld [vmem:[%s248 + $0xe0] sm:$0xff]
        %v291 = vld [vmem:[%s248 + $0xe8] sm:$0xff]
        %v292 = vld [vmem:[%s248 + $0xf0] sm:$0xff]
        %v293 = vld [vmem:[%s248 + $0xf8] sm:$0xff]
        %v294 = vld [vmem:[%s248 + $0x100] sm:$0xff]
        %v295 = vld [vmem:[%s248 + $0x108] sm:$0xff]
        %v296 = vld [vmem:[%s248 + $0x110] sm:$0xff]
        %v297 = vld [vmem:[%s248 + $0x118] sm:$0xff]
        %v298 = vld [vmem:[%s248 + $0x120] sm:$0xff]
        %v299 = vld [vmem:[%s248 + $0x128] sm:$0xff]
        %v300 = vld [vmem:[%s248 + $0x130] sm:$0xff]
        %v301 = vld [vmem:[%s248 + $0x138] sm:$0xff]
        %v302 = vld [vmem:[%s248 + $0x140] sm:$0xff]
        %v303 = vld [vmem:[%s248 + $0x148] sm:$0xff]
        %v304 = vld [vmem:[%s248 + $0x150] sm:$0xff]
        %v305 = vld [vmem:[%s248 + $0x158] sm:$0xff]
        %v306 = vld [vmem:[%s248 + $0x160] sm:$0xff]
        %v307 = vld [vmem:[%s248 + $0x168] sm:$0xff]
        %v308 = vld [vmem:[%s248 + $0x170] sm:$0xff]
        %v309 = vld [vmem:[%s248 + $0x178] sm:$0xff]
        %v310 = vld [vmem:[%s248 + $0x180] sm:$0xff]
        %v311 = vld [vmem:[%s248 + $0x188] sm:$0xff]
        %v312 = vld [vmem:[%s248 + $0x190] sm:$0xff]
        %v313 = vld [vmem:[%s248 + $0x198] sm:$0xff]
        %v314 = vld [vmem:[%s248 + $0x1a0] sm:$0xff]
        %v315 = vld [vmem:[%s248 + $0x1a8] sm:$0xff]
        %v316 = vld [vmem:[%s248 + $0x1b0] sm:$0xff]
        %v317 = vld [vmem:[%s248 + $0x1b8] sm:$0xff]
        %v318 = vld [vmem:[%s248 + $0x1c0] sm:$0xff]
        %v319 = vld [vmem:[%s248 + $0x1c8] sm:$0xff]
        %v320 = vld [vmem:[%s248 + $0x1d0] sm:$0xff]
        %v321 = vld [vmem:[%s248 + $0x1d8] sm:$0xff]
        %v322 = vld [vmem:[%s248 + $0x1e0] sm:$0xff]
        %v323 = vld [vmem:[%s248 + $0x1e8] sm:$0xff]
        %v324 = vld [vmem:[%s248 + $0x1f0] sm:$0xff]
        %v325 = vld [vmem:[%s248 + $0x1f8] sm:$0xff]
        %v326 = vld [vmem:[%s253] sm:$0xf]
        %v327 = vld [vmem:[%s253 + $0x4] sm:$0xf]
        %v328 = vld [vmem:[%s253 + $0x8] sm:$0xf]
        %v329 = vld [vmem:[%s253 + $0xc] sm:$0xf]
        %v330 = vld [vmem:[%s253 + $0x10] sm:$0xf]
        %v331 = vld [vmem:[%s253 + $0x14] sm:$0xf]
        %v332 = vld [vmem:[%s253 + $0x18] sm:$0xf]
        %v333 = vld [vmem:[%s253 + $0x1c] sm:$0xf]
        %v334 = vld [vmem:[%s253 + $0x20] sm:$0xf]
        %v335 = vld [vmem:[%s253 + $0x24] sm:$0xf]
        %v336 = vld [vmem:[%s253 + $0x28] sm:$0xf]
        %v337 = vld [vmem:[%s253 + $0x2c] sm:$0xf]
        %v338 = vld [vmem:[%s253 + $0x30] sm:$0xf]
        %v339 = vld [vmem:[%s253 + $0x34] sm:$0xf]
        %v340 = vld [vmem:[%s253 + $0x38] sm:$0xf]
        %v341 = vld [vmem:[%s253 + $0x3c] sm:$0xf]
        %v342 = vld [vmem:[%s253 + $0x40] sm:$0xf]
        %v343 = vld [vmem:[%s253 + $0x44] sm:$0xf]
        %v344 = vld [vmem:[%s253 + $0x48] sm:$0xf]
        %v345 = vld [vmem:[%s253 + $0x4c] sm:$0xf]
        %v346 = vld [vmem:[%s253 + $0x50] sm:$0xf]
        %v347 = vld [vmem:[%s253 + $0x54] sm:$0xf]
        %v348 = vld [vmem:[%s253 + $0x58] sm:$0xf]
        %v349 = vld [vmem:[%s253 + $0x5c] sm:$0xf]
        %v350 = vld [vmem:[%s253 + $0x60] sm:$0xf]
        %v351 = vld [vmem:[%s253 + $0x64] sm:$0xf]
        %v352 = vld [vmem:[%s253 + $0x68] sm:$0xf]
        %v353 = vld [vmem:[%s253 + $0x6c] sm:$0xf]
        %v354 = vld [vmem:[%s253 + $0x70] sm:$0xf]
        %v355 = vld [vmem:[%s253 + $0x74] sm:$0xf]
        %v356 = vld [vmem:[%s253 + $0x78] sm:$0xf]
        %v357 = vld [vmem:[%s253 + $0x7c] sm:$0xf]
        %v422 = vunpack.c.l.b16 %v262
        %v423 = vunpack.c.h.b16 %v262
        %v424 = vunpack.c.l.b16 %v263
        %v425 = vunpack.c.h.b16 %v263
        %v426 = vunpack.c.l.b16 %v264
        %v427 = vunpack.c.h.b16 %v264
        %v428 = vunpack.c.l.b16 %v265
        %v429 = vunpack.c.h.b16 %v265
        %v430 = vunpack.c.l.b16 %v266
        %v431 = vunpack.c.h.b16 %v266
        %v432 = vunpack.c.l.b16 %v267
        %v433 = vunpack.c.h.b16 %v267
        %v434 = vunpack.c.l.b16 %v268
        %v435 = vunpack.c.h.b16 %v268
        %v436 = vunpack.c.l.b16 %v269
        %v437 = vunpack.c.h.b16 %v269
        %v438 = vunpack.c.l.b16 %v270
        %v439 = vunpack.c.h.b16 %v270
        %v440 = vunpack.c.l.b16 %v271
        %v441 = vunpack.c.h.b16 %v271
        %v442 = vunpack.c.l.b16 %v272
        %v443 = vunpack.c.h.b16 %v272
        %v444 = vunpack.c.l.b16 %v273
        %v445 = vunpack.c.h.b16 %v273
        %v446 = vunpack.c.l.b16 %v274
        %v447 = vunpack.c.h.b16 %v274
        %v448 = vunpack.c.l.b16 %v275
        %v449 = vunpack.c.h.b16 %v275
        %v450 = vunpack.c.l.b16 %v276
        %v451 = vunpack.c.h.b16 %v276
        %v452 = vunpack.c.l.b16 %v277
        %v453 = vunpack.c.h.b16 %v277
        %v454 = vunpack.c.l.b16 %v278
        %v455 = vunpack.c.h.b16 %v278
        %v456 = vunpack.c.l.b16 %v279
        %v457 = vunpack.c.h.b16 %v279
        %v458 = vunpack.c.l.b16 %v280
        %v459 = vunpack.c.h.b16 %v280
        %v460 = vunpack.c.l.b16 %v281
        %v461 = vunpack.c.h.b16 %v281
        %v462 = vunpack.c.l.b16 %v282
        %v463 = vunpack.c.h.b16 %v282
        %v464 = vunpack.c.l.b16 %v283
        %v465 = vunpack.c.h.b16 %v283
        %v466 = vunpack.c.l.b16 %v284
        %v467 = vunpack.c.h.b16 %v284
        %v468 = vunpack.c.l.b16 %v285
        %v469 = vunpack.c.h.b16 %v285
        %v470 = vunpack.c.l.b16 %v286
        %v471 = vunpack.c.h.b16 %v286
        %v472 = vunpack.c.l.b16 %v287
        %v473 = vunpack.c.h.b16 %v287
        %v474 = vunpack.c.l.b16 %v288
        %v475 = vunpack.c.h.b16 %v288
        %v476 = vunpack.c.l.b16 %v289
        %v477 = vunpack.c.h.b16 %v289
        %v478 = vunpack.c.l.b16 %v290
        %v479 = vunpack.c.h.b16 %v290
        %v480 = vunpack.c.l.b16 %v291
        %v481 = vunpack.c.h.b16 %v291
        %v482 = vunpack.c.l.b16 %v292
        %v483 = vunpack.c.h.b16 %v292
        %v484 = vunpack.c.l.b16 %v293
        %v485 = vunpack.c.h.b16 %v293
        %v486 = vunpack.c.l.b16 %v294
        %v487 = vunpack.c.h.b16 %v294
        %v488 = vunpack.c.l.b16 %v295
        %v489 = vunpack.c.h.b16 %v295
        %v490 = vunpack.c.l.b16 %v296
        %v491 = vunpack.c.h.b16 %v296
        %v492 = vunpack.c.l.b16 %v297
        %v493 = vunpack.c.h.b16 %v297
        %v494 = vunpack.c.l.b16 %v298
        %v495 = vunpack.c.h.b16 %v298
        %v496 = vunpack.c.l.b16 %v299
        %v497 = vunpack.c.h.b16 %v299
        %v498 = vunpack.c.l.b16 %v300
        %v499 = vunpack.c.h.b16 %v300
        %v500 = vunpack.c.l.b16 %v301
        %v501 = vunpack.c.h.b16 %v301
        %v502 = vunpack.c.l.b16 %v302
        %v503 = vunpack.c.h.b16 %v302
        %v504 = vunpack.c.l.b16 %v303
        %v505 = vunpack.c.h.b16 %v303
        %v506 = vunpack.c.l.b16 %v304
        %v507 = vunpack.c.h.b16 %v304
        %v508 = vunpack.c.l.b16 %v305
        %v509 = vunpack.c.h.b16 %v305
        %v510 = vunpack.c.l.b16 %v306
        %v511 = vunpack.c.h.b16 %v306
        %v512 = vunpack.c.l.b16 %v307
        %v513 = vunpack.c.h.b16 %v307
        %v514 = vunpack.c.l.b16 %v308
        %v515 = vunpack.c.h.b16 %v308
        %v516 = vunpack.c.l.b16 %v309
        %v517 = vunpack.c.h.b16 %v309
        %v518 = vunpack.c.l.b16 %v310
        %v519 = vunpack.c.h.b16 %v310
        %v520 = vunpack.c.l.b16 %v311
        %v521 = vunpack.c.h.b16 %v311
        %v522 = vunpack.c.l.b16 %v312
        %v523 = vunpack.c.h.b16 %v312
        %v524 = vunpack.c.l.b16 %v313
        %v525 = vunpack.c.h.b16 %v313
        %v526 = vunpack.c.l.b16 %v314
        %v527 = vunpack.c.h.b16 %v314
        %v528 = vunpack.c.l.b16 %v315
        %v529 = vunpack.c.h.b16 %v315
        %v530 = vunpack.c.l.b16 %v316
        %v531 = vunpack.c.h.b16 %v316
        %v532 = vunpack.c.l.b16 %v317
        %v533 = vunpack.c.h.b16 %v317
        %v534 = vunpack.c.l.b16 %v318
        %v535 = vunpack.c.h.b16 %v318
        %v536 = vunpack.c.l.b16 %v319
        %v537 = vunpack.c.h.b16 %v319
        %v538 = vunpack.c.l.b16 %v320
        %v539 = vunpack.c.h.b16 %v320
        %v540 = vunpack.c.l.b16 %v321
        %v541 = vunpack.c.h.b16 %v321
        %v542 = vunpack.c.l.b16 %v322
        %v543 = vunpack.c.h.b16 %v322
        %v544 = vunpack.c.l.b16 %v323
        %v545 = vunpack.c.h.b16 %v323
        %v546 = vunpack.c.l.b16 %v324
        %v547 = vunpack.c.h.b16 %v324
        %v548 = vunpack.c.l.b16 %v325
        %v549 = vunpack.c.h.b16 %v325
        %v550 = vpack.c.b16 %v424, %v422
        %v551 = vpack.c.b16 %v425, %v423
        %v552 = vpack.c.b16 %v428, %v426
        %v553 = vpack.c.b16 %v429, %v427
        %v554 = vpack.c.b16 %v432, %v430
        %v555 = vpack.c.b16 %v433, %v431
        %v556 = vpack.c.b16 %v436, %v434
        %v557 = vpack.c.b16 %v437, %v435
        %v558 = vpack.c.b16 %v440, %v438
        %v559 = vpack.c.b16 %v441, %v439
        %v560 = vpack.c.b16 %v444, %v442
        %v561 = vpack.c.b16 %v445, %v443
        %v562 = vpack.c.b16 %v448, %v446
        %v563 = vpack.c.b16 %v449, %v447
        %v564 = vpack.c.b16 %v452, %v450
        %v565 = vpack.c.b16 %v453, %v451
        %v566 = vpack.c.b16 %v456, %v454
        %v567 = vpack.c.b16 %v457, %v455
        %v568 = vpack.c.b16 %v460, %v458
        %v569 = vpack.c.b16 %v461, %v459
        %v570 = vpack.c.b16 %v464, %v462
        %v571 = vpack.c.b16 %v465, %v463
        %v572 = vpack.c.b16 %v468, %v466
        %v573 = vpack.c.b16 %v469, %v467
        %v574 = vpack.c.b16 %v472, %v470
        %v575 = vpack.c.b16 %v473, %v471
        %v576 = vpack.c.b16 %v476, %v474
        %v577 = vpack.c.b16 %v477, %v475
        %v578 = vpack.c.b16 %v480, %v478
        %v579 = vpack.c.b16 %v481, %v479
        %v580 = vpack.c.b16 %v484, %v482
        %v581 = vpack.c.b16 %v485, %v483
        %v582 = vpack.c.b16 %v488, %v486
        %v583 = vpack.c.b16 %v489, %v487
        %v584 = vpack.c.b16 %v492, %v490
        %v585 = vpack.c.b16 %v493, %v491
        %v586 = vpack.c.b16 %v496, %v494
        %v587 = vpack.c.b16 %v497, %v495
        %v588 = vpack.c.b16 %v500, %v498
        %v589 = vpack.c.b16 %v501, %v499
        %v590 = vpack.c.b16 %v504, %v502
        %v591 = vpack.c.b16 %v505, %v503
        %v592 = vpack.c.b16 %v508, %v506
        %v593 = vpack.c.b16 %v509, %v507
        %v594 = vpack.c.b16 %v512, %v510
        %v595 = vpack.c.b16 %v513, %v511
        %v596 = vpack.c.b16 %v516, %v514
        %v597 = vpack.c.b16 %v517, %v515
        %v598 = vpack.c.b16 %v520, %v518
        %v599 = vpack.c.b16 %v521, %v519
        %v600 = vpack.c.b16 %v524, %v522
        %v601 = vpack.c.b16 %v525, %v523
        %v602 = vpack.c.b16 %v528, %v526
        %v603 = vpack.c.b16 %v529, %v527
        %v604 = vpack.c.b16 %v532, %v530
        %v605 = vpack.c.b16 %v533, %v531
        %v606 = vpack.c.b16 %v536, %v534
        %v607 = vpack.c.b16 %v537, %v535
        %v608 = vpack.c.b16 %v540, %v538
        %v609 = vpack.c.b16 %v541, %v539
        %v610 = vpack.c.b16 %v544, %v542
        %v611 = vpack.c.b16 %v545, %v543
        %v612 = vpack.c.b16 %v548, %v546
        %v613 = vpack.c.b16 %v549, %v547
        %v710 = vunpack.c.l.b16 %v326
        %v711 = vunpack.c.l.b16 %v327
        %v712 = vunpack.c.l.b16 %v328
        %v713 = vunpack.c.l.b16 %v329
        %v714 = vunpack.c.l.b16 %v330
        %v715 = vunpack.c.l.b16 %v331
        %v716 = vunpack.c.l.b16 %v332
        %v717 = vunpack.c.l.b16 %v333
        %v718 = vunpack.c.l.b16 %v334
        %v719 = vunpack.c.l.b16 %v335
        %v720 = vunpack.c.l.b16 %v336
        %v721 = vunpack.c.l.b16 %v337
        %v722 = vunpack.c.l.b16 %v338
        %v723 = vunpack.c.l.b16 %v339
        %v724 = vunpack.c.l.b16 %v340
        %v725 = vunpack.c.l.b16 %v341
        %v726 = vunpack.c.l.b16 %v342
        %v727 = vunpack.c.l.b16 %v343
        %v728 = vunpack.c.l.b16 %v344
        %v729 = vunpack.c.l.b16 %v345
        %v730 = vunpack.c.l.b16 %v346
        %v731 = vunpack.c.l.b16 %v347
        %v732 = vunpack.c.l.b16 %v348
        %v733 = vunpack.c.l.b16 %v349
        %v734 = vunpack.c.l.b16 %v350
        %v735 = vunpack.c.l.b16 %v351
        %v736 = vunpack.c.l.b16 %v352
        %v737 = vunpack.c.l.b16 %v353
        %v738 = vunpack.c.l.b16 %v354
        %v739 = vunpack.c.l.b16 %v355
        %v740 = vunpack.c.l.b16 %v356
        %v741 = vunpack.c.l.b16 %v357
        %v742 = vpack.c.b16 %v711, %v710
        %v743 = vpack.c.b16 %v713, %v712
        %v744 = vpack.c.b16 %v715, %v714
        %v745 = vpack.c.b16 %v717, %v716
        %v746 = vpack.c.b16 %v719, %v718
        %v747 = vpack.c.b16 %v721, %v720
        %v748 = vpack.c.b16 %v723, %v722
        %v749 = vpack.c.b16 %v725, %v724
        %v750 = vpack.c.b16 %v727, %v726
        %v751 = vpack.c.b16 %v729, %v728
        %v752 = vpack.c.b16 %v731, %v730
        %v753 = vpack.c.b16 %v733, %v732
        %v754 = vpack.c.b16 %v735, %v734
        %v755 = vpack.c.b16 %v737, %v736
        %v756 = vpack.c.b16 %v739, %v738
        %v757 = vpack.c.b16 %v741, %v740
        %774 = vmatprep.subr.bf16.mxu0 0
        %775 = vmatpush1.bf16.msra.mxu0 %v742
        %776 = vmatprep.subr.bf16.mxu0 0
        %777 = vmatpush1.bf16.msra.mxu0 %v743
        %778 = vmatprep.subr.bf16.mxu0 0
        %779 = vmatpush1.bf16.msra.mxu0 %v744
        %780 = vmatprep.subr.bf16.mxu0 0
        %781 = vmatpush1.bf16.msra.mxu0 %v745
        %782 = vmatprep.subr.bf16.mxu0 0
        %783 = vmatpush1.bf16.msra.mxu0 %v746
        %784 = vmatprep.subr.bf16.mxu0 0
        %785 = vmatpush1.bf16.msra.mxu0 %v747
        %786 = vmatprep.subr.bf16.mxu0 0
        %787 = vmatpush1.bf16.msra.mxu0 %v748
        %788 = vmatprep.subr.bf16.mxu0 0
        %789 = vmatpush1.bf16.msra.mxu0 %v749
        %790 = vmatprep.subr.bf16.mxu0 0
        %791 = vmatpush1.bf16.msra.mxu0 %v750
        %792 = vmatprep.subr.bf16.mxu0 0
        %793 = vmatpush1.bf16.msra.mxu0 %v751
        %794 = vmatprep.subr.bf16.mxu0 0
        %795 = vmatpush1.bf16.msra.mxu0 %v752
        %796 = vmatprep.subr.bf16.mxu0 0
        %797 = vmatpush1.bf16.msra.mxu0 %v753
        %798 = vmatprep.subr.bf16.mxu0 0
        %799 = vmatpush1.bf16.msra.mxu0 %v754
        %800 = vmatprep.subr.bf16.mxu0 0
        %801 = vmatpush1.bf16.msra.mxu0 %v755
        %802 = vmatprep.subr.bf16.mxu0 0
        %803 = vmatpush1.bf16.msra.mxu0 %v756
        %804 = vmatprep.subr.bf16.mxu0 0
        %805 = vmatpush1.bf16.msra.mxu0 %v757
        %806 = vmatprep.mubr.bf16.mxu0 %v551
        %807 = vmatmul.mubr.bf16.gmra.mrb[0].mxu0 %v550
        %v808 = vpop.f32.mrb[0].mxu0
        %v809 = vadd.f32 0.0, %v808
        %v810 = vpop.f32.mrb[0].mxu0
        %v811 = vpop.f32.mrb[0].mxu0
        %v812 = vadd.f32 0.0, %v811
        %v813 = vpop.f32.mrb[0].mxu0
        %814 = vmatprep.mubr.bf16.mxu0 %v553
        %815 = vmatmul.mubr.bf16.gmra.mrb[0].mxu0 %v552
        %v816 = vpop.f32.mrb[0].mxu0
        %v817 = vadd.f32 0.0, %v816
        %v818 = vpop.f32.mrb[0].mxu0
        %v819 = vpop.f32.mrb[0].mxu0
        %v820 = vadd.f32 0.0, %v819
        %v821 = vpop.f32.mrb[0].mxu0
        %822 = vmatprep.mubr.bf16.mxu0 %v555
        %823 = vmatmul.mubr.bf16.gmra.mrb[0].mxu0 %v554
        %v824 = vpop.f32.mrb[0].mxu0
        %v825 = vadd.f32 0.0, %v824
        %v826 = vpop.f32.mrb[0].mxu0
        %v827 = vpop.f32.mrb[0].mxu0
        %v828 = vadd.f32 0.0, %v827
        %v829 = vpop.f32.mrb[0].mxu0
        %830 = vmatprep.mubr.bf16.mxu0 %v557
        %831 = vmatmul.mubr.bf16.gmra.mrb[0].mxu0 %v556
        %v832 = vpop.f32.mrb[0].mxu0
        %v833 = vadd.f32 0.0, %v832
        %v834 = vpop.f32.mrb[0].mxu0
        %v835 = vpop.f32.mrb[0].mxu0
        %v836 = vadd.f32 0.0, %v835
        %v837 = vpop.f32.mrb[0].mxu0
        %838 = vmatprep.mubr.bf16.mxu0 %v559
        %839 = vmatmul.mubr.bf16.gmra.mrb[0].mxu0 %v558
        %v840 = vpop.f32.mrb[0].mxu0
        %v841 = vadd.f32 0.0, %v840
        %v842 = vpop.f32.mrb[0].mxu0
        %v843 = vpop.f32.mrb[0].mxu0
        %v844 = vadd.f32 0.0, %v843
        %v845 = vpop.f32.mrb[0].mxu0
        %846 = vmatprep.mubr.bf16.mxu0 %v561
        %847 = vmatmul.mubr.bf16.gmra.mrb[0].mxu0 %v560
        %v848 = vpop.f32.mrb[0].mxu0
        %v849 = vadd.f32 0.0, %v848
        %v850 = vpop.f32.mrb[0].mxu0
        %v851 = vpop.f32.mrb[0].mxu0
        %v852 = vadd.f32 0.0, %v851
        %v853 = vpop.f32.mrb[0].mxu0
        %854 = vmatprep.mubr.bf16.mxu0 %v563
        %855 = vmatmul.mubr.bf16.gmra.mrb[0].mxu0 %v562
        %v856 = vpop.f32.mrb[0].mxu0
        %v857 = vadd.f32 0.0, %v856
        %v858 = vpop.f32.mrb[0].mxu0
        %v859 = vpop.f32.mrb[0].mxu0
        %v860 = vadd.f32 0.0, %v859
        %v861 = vpop.f32.mrb[0].mxu0
        %862 = vmatprep.mubr.bf16.mxu0 %v565
        %863 = vmatmul.mubr.bf16.gmra.mrb[0].mxu0 %v564
        %v864 = vpop.f32.mrb[0].mxu0
        %v865 = vadd.f32 0.0, %v864
        %v866 = vpop.f32.mrb[0].mxu0
        %v867 = vpop.f32.mrb[0].mxu0
        %v868 = vadd.f32 0.0, %v867
        %v869 = vpop.f32.mrb[0].mxu0
        %870 = vmatprep.mubr.bf16.mxu0 %v567
        %871 = vmatmul.mubr.bf16.gmra.mrb[0].mxu0 %v566
        %v872 = vpop.f32.mrb[0].mxu0
        %v873 = vadd.f32 0.0, %v872
        %v874 = vpop.f32.mrb[0].mxu0
        %v875 = vpop.f32.mrb[0].mxu0
        %v876 = vadd.f32 0.0, %v875
        %v877 = vpop.f32.mrb[0].mxu0
        %878 = vmatprep.mubr.bf16.mxu0 %v569
        %879 = vmatmul.mubr.bf16.gmra.mrb[0].mxu0 %v568
        %v880 = vpop.f32.mrb[0].mxu0
        %v881 = vadd.f32 0.0, %v880
        %v882 = vpop.f32.mrb[0].mxu0
        %v883 = vpop.f32.mrb[0].mxu0
        %v884 = vadd.f32 0.0, %v883
        %v885 = vpop.f32.mrb[0].mxu0
        %886 = vmatprep.mubr.bf16.mxu0 %v571
        %887 = vmatmul.mubr.bf16.gmra.mrb[0].mxu0 %v570
        %v888 = vpop.f32.mrb[0].mxu0
        %v889 = vadd.f32 0.0, %v888
        %v890 = vpop.f32.mrb[0].mxu0
        %v891 = vpop.f32.mrb[0].mxu0
        %v892 = vadd.f32 0.0, %v891
        %v893 = vpop.f32.mrb[0].mxu0
        %894 = vmatprep.mubr.bf16.mxu0 %v573
        %895 = vmatmul.mubr.bf16.gmra.mrb[0].mxu0 %v572
        %v896 = vpop.f32.mrb[0].mxu0
        %v897 = vadd.f32 0.0, %v896
        %v898 = vpop.f32.mrb[0].mxu0
        %v899 = vpop.f32.mrb[0].mxu0
        %v900 = vadd.f32 0.0, %v899
        %v901 = vpop.f32.mrb[0].mxu0
        %902 = vmatprep.mubr.bf16.mxu0 %v575
        %903 = vmatmul.mubr.bf16.gmra.mrb[0].mxu0 %v574
        %v904 = vpop.f32.mrb[0].mxu0
        %v905 = vadd.f32 0.0, %v904
        %v906 = vpop.f32.mrb[0].mxu0
        %v907 = vpop.f32.mrb[0].mxu0
        %v908 = vadd.f32 0.0, %v907
        %v909 = vpop.f32.mrb[0].mxu0
        %910 = vmatprep.mubr.bf16.mxu0 %v577
        %911 = vmatmul.mubr.bf16.gmra.mrb[0].mxu0 %v576
        %v912 = vpop.f32.mrb[0].mxu0
        %v913 = vadd.f32 0.0, %v912
        %v914 = vpop.f32.mrb[0].mxu0
        %v915 = vpop.f32.mrb[0].mxu0
        %v916 = vadd.f32 0.0, %v915
        %v917 = vpop.f32.mrb[0].mxu0
        %918 = vmatprep.mubr.bf16.mxu0 %v579
        %919 = vmatmul.mubr.bf16.gmra.mrb[0].mxu0 %v578
        %v920 = vpop.f32.mrb[0].mxu0
        %v921 = vadd.f32 0.0, %v920
        %v922 = vpop.f32.mrb[0].mxu0
        %v923 = vpop.f32.mrb[0].mxu0
        %v924 = vadd.f32 0.0, %v923
        %v925 = vpop.f32.mrb[0].mxu0
        %926 = vmatprep.mubr.bf16.mxu0 %v581
        %927 = vmatmul.mubr.bf16.gmra.mrb[0].mxu0 %v580
        %v928 = vpop.f32.mrb[0].mxu0
        %v929 = vadd.f32 0.0, %v928
        %v930 = vpop.f32.mrb[0].mxu0
        %v931 = vpop.f32.mrb[0].mxu0
        %v932 = vadd.f32 0.0, %v931
        %v933 = vpop.f32.mrb[0].mxu0
        %934 = vmatprep.mubr.bf16.mxu0 %v583
        %935 = vmatmul.mubr.bf16.gmra.mrb[0].mxu0 %v582
        %v936 = vpop.f32.mrb[0].mxu0
        %v937 = vadd.f32 0.0, %v936
        %v938 = vpop.f32.mrb[0].mxu0
        %v939 = vpop.f32.mrb[0].mxu0
        %v940 = vadd.f32 0.0, %v939
        %v941 = vpop.f32.mrb[0].mxu0
        %942 = vmatprep.mubr.bf16.mxu0 %v585
        %943 = vmatmul.mubr.bf16.gmra.mrb[0].mxu0 %v584
        %v944 = vpop.f32.mrb[0].mxu0
        %v945 = vadd.f32 0.0, %v944
        %v946 = vpop.f32.mrb[0].mxu0
        %v947 = vpop.f32.mrb[0].mxu0
        %v948 = vadd.f32 0.0, %v947
        %v949 = vpop.f32.mrb[0].mxu0
        %950 = vmatprep.mubr.bf16.mxu0 %v587
        %951 = vmatmul.mubr.bf16.gmra.mrb[0].mxu0 %v586
        %v952 = vpop.f32.mrb[0].mxu0
        %v953 = vadd.f32 0.0, %v952
        %v954 = vpop.f32.mrb[0].mxu0
        %v955 = vpop.f32.mrb[0].mxu0
        %v956 = vadd.f32 0.0, %v955
        %v957 = vpop.f32.mrb[0].mxu0
        %958 = vmatprep.mubr.bf16.mxu0 %v589
        %959 = vmatmul.mubr.bf16.gmra.mrb[0].mxu0 %v588
        %v960 = vpop.f32.mrb[0].mxu0
        %v961 = vadd.f32 0.0, %v960
        %v962 = vpop.f32.mrb[0].mxu0
        %v963 = vpop.f32.mrb[0].mxu0
        %v964 = vadd.f32 0.0, %v963
        %v965 = vpop.f32.mrb[0].mxu0
        %966 = vmatprep.mubr.bf16.mxu0 %v591
        %967 = vmatmul.mubr.bf16.gmra.mrb[0].mxu0 %v590
        %v968 = vpop.f32.mrb[0].mxu0
        %v969 = vadd.f32 0.0, %v968
        %v970 = vpop.f32.mrb[0].mxu0
        %v971 = vpop.f32.mrb[0].mxu0
        %v972 = vadd.f32 0.0, %v971
        %v973 = vpop.f32.mrb[0].mxu0
        %974 = vmatprep.mubr.bf16.mxu0 %v593
        %975 = vmatmul.mubr.bf16.gmra.mrb[0].mxu0 %v592
        %v976 = vpop.f32.mrb[0].mxu0
        %v977 = vadd.f32 0.0, %v976
        %v978 = vpop.f32.mrb[0].mxu0
        %v979 = vpop.f32.mrb[0].mxu0
        %v980 = vadd.f32 0.0, %v979
        %v981 = vpop.f32.mrb[0].mxu0
        %982 = vmatprep.mubr.bf16.mxu0 %v595
        %983 = vmatmul.mubr.bf16.gmra.mrb[0].mxu0 %v594
        %v984 = vpop.f32.mrb[0].mxu0
        %v985 = vadd.f32 0.0, %v984
        %v986 = vpop.f32.mrb[0].mxu0
        %v987 = vpop.f32.mrb[0].mxu0
        %v988 = vadd.f32 0.0, %v987
        %v989 = vpop.f32.mrb[0].mxu0
        %990 = vmatprep.mubr.bf16.mxu0 %v597
        %991 = vmatmul.mubr.bf16.gmra.mrb[0].mxu0 %v596
        %v992 = vpop.f32.mrb[0].mxu0
        %v993 = vadd.f32 0.0, %v992
        %v994 = vpop.f32.mrb[0].mxu0
        %v995 = vpop.f32.mrb[0].mxu0
        %v996 = vadd.f32 0.0, %v995
        %v997 = vpop.f32.mrb[0].mxu0
        %998 = vmatprep.mubr.bf16.mxu0 %v599
        %999 = vmatmul.mubr.bf16.gmra.mrb[0].mxu0 %v598
        %v1000 = vpop.f32.mrb[0].mxu0
        %v1001 = vadd.f32 0.0, %v1000
        %v1002 = vpop.f32.mrb[0].mxu0
        %v1003 = vpop.f32.mrb[0].mxu0
        %v1004 = vadd.f32 0.0, %v1003
        %v1005 = vpop.f32.mrb[0].mxu0
        %1006 = vmatprep.mubr.bf16.mxu0 %v601
        %1007 = vmatmul.mubr.bf16.gmra.mrb[0].mxu0 %v600
        %v1008 = vpop.f32.mrb[0].mxu0
        %v1009 = vadd.f32 0.0, %v1008
        %v1010 = vpop.f32.mrb[0].mxu0
        %v1011 = vpop.f32.mrb[0].mxu0
        %v1012 = vadd.f32 0.0, %v1011
        %v1013 = vpop.f32.mrb[0].mxu0
        %1014 = vmatprep.mubr.bf16.mxu0 %v603
        %1015 = vmatmul.mubr.bf16.gmra.mrb[0].mxu0 %v602
        %v1016 = vpop.f32.mrb[0].mxu0
        %v1017 = vadd.f32 0.0, %v1016
        %v1018 = vpop.f32.mrb[0].mxu0
        %v1019 = vpop.f32.mrb[0].mxu0
        %v1020 = vadd.f32 0.0, %v1019
        %v1021 = vpop.f32.mrb[0].mxu0
        %1022 = vmatprep.mubr.bf16.mxu0 %v605
        %1023 = vmatmul.mubr.bf16.gmra.mrb[0].mxu0 %v604
        %v1024 = vpop.f32.mrb[0].mxu0
        %v1025 = vadd.f32 0.0, %v1024
        %v1026 = vpop.f32.mrb[0].mxu0
        %v1027 = vpop.f32.mrb[0].mxu0
        %v1028 = vadd.f32 0.0, %v1027
        %v1029 = vpop.f32.mrb[0].mxu0
        %1030 = vmatprep.mubr.bf16.mxu0 %v607
        %1031 = vmatmul.mubr.bf16.gmra.mrb[0].mxu0 %v606
        %v1032 = vpop.f32.mrb[0].mxu0
        %v1033 = vadd.f32 0.0, %v1032
        %v1034 = vpop.f32.mrb[0].mxu0
        %v1035 = vpop.f32.mrb[0].mxu0
        %v1036 = vadd.f32 0.0, %v1035
        %v1037 = vpop.f32.mrb[0].mxu0
        %1038 = vmatprep.mubr.bf16.mxu0 %v609
        %1039 = vmatmul.mubr.bf16.gmra.mrb[0].mxu0 %v608
        %v1040 = vpop.f32.mrb[0].mxu0
        %v1041 = vadd.f32 0.0, %v1040
        %v1042 = vpop.f32.mrb[0].mxu0
        %v1043 = vpop.f32.mrb[0].mxu0
        %v1044 = vadd.f32 0.0, %v1043
        %v1045 = vpop.f32.mrb[0].mxu0
        %1046 = vmatprep.mubr.bf16.mxu0 %v611
        %1047 = vmatmul.mubr.bf16.gmra.mrb[0].mxu0 %v610
        %v1048 = vpop.f32.mrb[0].mxu0
        %v1049 = vadd.f32 0.0, %v1048
        %v1050 = vpop.f32.mrb[0].mxu0
        %v1051 = vpop.f32.mrb[0].mxu0
        %v1052 = vadd.f32 0.0, %v1051
        %v1053 = vpop.f32.mrb[0].mxu0
        %1054 = vmatprep.mubr.bf16.mxu0 %v613
        %1055 = vmatmul.mubr.bf16.gmra.mrb[0].mxu0 %v612
        %v1056 = vpop.f32.mrb[0].mxu0
        %v1057 = vadd.f32 0.0, %v1056
        %v1058 = vpop.f32.mrb[0].mxu0
        %v1059 = vpop.f32.mrb[0].mxu0
        %v1060 = vadd.f32 0.0, %v1059
        %v1061 = vpop.f32.mrb[0].mxu0
        %1062 = vdwg.mxu0
        %v1063 = vld [vmem:[%s256] sm:$0x1]
        %v1065 = vlaneseq
        %v1066 = vshrl.u32 %v1065, 7
        %v1067 = vsub.s32 0, %v1066
        %v1068 = vrot.slane %v1063, %v1067
        %v1070 = vmul.f32 %v809, %v1068
        %v1071 = vmul.f32 %v812, %v1068
        %v1072 = vmul.f32 %v817, %v1068
        %v1073 = vmul.f32 %v820, %v1068
        %v1074 = vmul.f32 %v825, %v1068
        %v1075 = vmul.f32 %v828, %v1068
        %v1076 = vmul.f32 %v833, %v1068
        %v1077 = vmul.f32 %v836, %v1068
        %v1078 = vmul.f32 %v841, %v1068
        %v1079 = vmul.f32 %v844, %v1068
        %v1080 = vmul.f32 %v849, %v1068
        %v1081 = vmul.f32 %v852, %v1068
        %v1082 = vmul.f32 %v857, %v1068
        %v1083 = vmul.f32 %v860, %v1068
        %v1084 = vmul.f32 %v865, %v1068
        %v1085 = vmul.f32 %v868, %v1068
        %v1086 = vmul.f32 %v873, %v1068
        %v1087 = vmul.f32 %v876, %v1068
        %v1088 = vmul.f32 %v881, %v1068
        %v1089 = vmul.f32 %v884, %v1068
        %v1090 = vmul.f32 %v889, %v1068
        %v1091 = vmul.f32 %v892, %v1068
        %v1092 = vmul.f32 %v897, %v1068
        %v1093 = vmul.f32 %v900, %v1068
        %v1094 = vmul.f32 %v905, %v1068
        %v1095 = vmul.f32 %v908, %v1068
        %v1096 = vmul.f32 %v913, %v1068
        %v1097 = vmul.f32 %v916, %v1068
        %v1098 = vmul.f32 %v921, %v1068
        %v1099 = vmul.f32 %v924, %v1068
        %v1100 = vmul.f32 %v929, %v1068
        %v1101 = vmul.f32 %v932, %v1068
        %v1102 = vmul.f32 %v937, %v1068
        %v1103 = vmul.f32 %v940, %v1068
        %v1104 = vmul.f32 %v945, %v1068
        %v1105 = vmul.f32 %v948, %v1068
        %v1106 = vmul.f32 %v953, %v1068
        %v1107 = vmul.f32 %v956, %v1068
        %v1108 = vmul.f32 %v961, %v1068
        %v1109 = vmul.f32 %v964, %v1068
        %v1110 = vmul.f32 %v969, %v1068
        %v1111 = vmul.f32 %v972, %v1068
        %v1112 = vmul.f32 %v977, %v1068
        %v1113 = vmul.f32 %v980, %v1068
        %v1114 = vmul.f32 %v985, %v1068
        %v1115 = vmul.f32 %v988, %v1068
        %v1116 = vmul.f32 %v993, %v1068
        %v1117 = vmul.f32 %v996, %v1068
        %v1118 = vmul.f32 %v1001, %v1068
        %v1119 = vmul.f32 %v1004, %v1068
        %v1120 = vmul.f32 %v1009, %v1068
        %v1121 = vmul.f32 %v1012, %v1068
        %v1122 = vmul.f32 %v1017, %v1068
        %v1123 = vmul.f32 %v1020, %v1068
        %v1124 = vmul.f32 %v1025, %v1068
        %v1125 = vmul.f32 %v1028, %v1068
        %v1126 = vmul.f32 %v1033, %v1068
        %v1127 = vmul.f32 %v1036, %v1068
        %v1128 = vmul.f32 %v1041, %v1068
        %v1129 = vmul.f32 %v1044, %v1068
        %v1130 = vmul.f32 %v1049, %v1068
        %v1131 = vmul.f32 %v1052, %v1068
        %v1132 = vmul.f32 %v1057, %v1068
        %v1133 = vmul.f32 %v1060, %v1068
        %v1134 = vld [vmem:[%s259] sm:$0x1]
        %v1136 = vlaneseq
        %v1137 = vshrl.u32 %v1136, 7
        %v1138 = vsub.s32 0, %v1137
        %v1139 = vrot.slane %v1134, %v1138
        %v1141 = vadd.f32 %v1070, %v1139
        %v1142 = vadd.f32 %v1071, %v1139
        %v1143 = vadd.f32 %v1072, %v1139
        %v1144 = vadd.f32 %v1073, %v1139
        %v1145 = vadd.f32 %v1074, %v1139
        %v1146 = vadd.f32 %v1075, %v1139
        %v1147 = vadd.f32 %v1076, %v1139
        %v1148 = vadd.f32 %v1077, %v1139
        %v1149 = vadd.f32 %v1078, %v1139
        %v1150 = vadd.f32 %v1079, %v1139
        %v1151 = vadd.f32 %v1080, %v1139
        %v1152 = vadd.f32 %v1081, %v1139
        %v1153 = vadd.f32 %v1082, %v1139
        %v1154 = vadd.f32 %v1083, %v1139
        %v1155 = vadd.f32 %v1084, %v1139
        %v1156 = vadd.f32 %v1085, %v1139
        %v1157 = vadd.f32 %v1086, %v1139
        %v1158 = vadd.f32 %v1087, %v1139
        %v1159 = vadd.f32 %v1088, %v1139
        %v1160 = vadd.f32 %v1089, %v1139
        %v1161 = vadd.f32 %v1090, %v1139
        %v1162 = vadd.f32 %v1091, %v1139
        %v1163 = vadd.f32 %v1092, %v1139
        %v1164 = vadd.f32 %v1093, %v1139
        %v1165 = vadd.f32 %v1094, %v1139
        %v1166 = vadd.f32 %v1095, %v1139
        %v1167 = vadd.f32 %v1096, %v1139
        %v1168 = vadd.f32 %v1097, %v1139
        %v1169 = vadd.f32 %v1098, %v1139
        %v1170 = vadd.f32 %v1099, %v1139
        %v1171 = vadd.f32 %v1100, %v1139
        %v1172 = vadd.f32 %v1101, %v1139
        %v1173 = vadd.f32 %v1102, %v1139
        %v1174 = vadd.f32 %v1103, %v1139
        %v1175 = vadd.f32 %v1104, %v1139
        %v1176 = vadd.f32 %v1105, %v1139
        %v1177 = vadd.f32 %v1106, %v1139
        %v1178 = vadd.f32 %v1107, %v1139
        %v1179 = vadd.f32 %v1108, %v1139
        %v1180 = vadd.f32 %v1109, %v1139
        %v1181 = vadd.f32 %v1110, %v1139
        %v1182 = vadd.f32 %v1111, %v1139
        %v1183 = vadd.f32 %v1112, %v1139
        %v1184 = vadd.f32 %v1113, %v1139
        %v1185 = vadd.f32 %v1114, %v1139
        %v1186 = vadd.f32 %v1115, %v1139
        %v1187 = vadd.f32 %v1116, %v1139
        %v1188 = vadd.f32 %v1117, %v1139
        %v1189 = vadd.f32 %v1118, %v1139
        %v1190 = vadd.f32 %v1119, %v1139
        %v1191 = vadd.f32 %v1120, %v1139
        %v1192 = vadd.f32 %v1121, %v1139
        %v1193 = vadd.f32 %v1122, %v1139
        %v1194 = vadd.f32 %v1123, %v1139
        %v1195 = vadd.f32 %v1124, %v1139
        %v1196 = vadd.f32 %v1125, %v1139
        %v1197 = vadd.f32 %v1126, %v1139
        %v1198 = vadd.f32 %v1127, %v1139
        %v1199 = vadd.f32 %v1128, %v1139
        %v1200 = vadd.f32 %v1129, %v1139
        %v1201 = vadd.f32 %v1130, %v1139
        %v1202 = vadd.f32 %v1131, %v1139
        %v1203 = vadd.f32 %v1132, %v1139
        %v1204 = vadd.f32 %v1133, %v1139
        %v1205 = vmax.f32 %v1141, 0.0
        %v1206 = vmax.f32 %v1142, 0.0
        %v1207 = vmax.f32 %v1143, 0.0
        %v1208 = vmax.f32 %v1144, 0.0
        %v1209 = vmax.f32 %v1145, 0.0
        %v1210 = vmax.f32 %v1146, 0.0
        %v1211 = vmax.f32 %v1147, 0.0
        %v1212 = vmax.f32 %v1148, 0.0
        %v1213 = vmax.f32 %v1149, 0.0
        %v1214 = vmax.f32 %v1150, 0.0
        %v1215 = vmax.f32 %v1151, 0.0
        %v1216 = vmax.f32 %v1152, 0.0
        %v1217 = vmax.f32 %v1153, 0.0
        %v1218 = vmax.f32 %v1154, 0.0
        %v1219 = vmax.f32 %v1155, 0.0
        %v1220 = vmax.f32 %v1156, 0.0
        %v1221 = vmax.f32 %v1157, 0.0
        %v1222 = vmax.f32 %v1158, 0.0
        %v1223 = vmax.f32 %v1159, 0.0
        %v1224 = vmax.f32 %v1160, 0.0
        %v1225 = vmax.f32 %v1161, 0.0
        %v1226 = vmax.f32 %v1162, 0.0
        %v1227 = vmax.f32 %v1163, 0.0
        %v1228 = vmax.f32 %v1164, 0.0
        %v1229 = vmax.f32 %v1165, 0.0
        %v1230 = vmax.f32 %v1166, 0.0
        %v1231 = vmax.f32 %v1167, 0.0
        %v1232 = vmax.f32 %v1168, 0.0
        %v1233 = vmax.f32 %v1169, 0.0
        %v1234 = vmax.f32 %v1170, 0.0
        %v1235 = vmax.f32 %v1171, 0.0
        %v1236 = vmax.f32 %v1172, 0.0
        %v1237 = vmax.f32 %v1173, 0.0
        %v1238 = vmax.f32 %v1174, 0.0
        %v1239 = vmax.f32 %v1175, 0.0
        %v1240 = vmax.f32 %v1176, 0.0
        %v1241 = vmax.f32 %v1177, 0.0
        %v1242 = vmax.f32 %v1178, 0.0
        %v1243 = vmax.f32 %v1179, 0.0
        %v1244 = vmax.f32 %v1180, 0.0
        %v1245 = vmax.f32 %v1181, 0.0
        %v1246 = vmax.f32 %v1182, 0.0
        %v1247 = vmax.f32 %v1183, 0.0
        %v1248 = vmax.f32 %v1184, 0.0
        %v1249 = vmax.f32 %v1185, 0.0
        %v1250 = vmax.f32 %v1186, 0.0
        %v1251 = vmax.f32 %v1187, 0.0
        %v1252 = vmax.f32 %v1188, 0.0
        %v1253 = vmax.f32 %v1189, 0.0
        %v1254 = vmax.f32 %v1190, 0.0
        %v1255 = vmax.f32 %v1191, 0.0
        %v1256 = vmax.f32 %v1192, 0.0
        %v1257 = vmax.f32 %v1193, 0.0
        %v1258 = vmax.f32 %v1194, 0.0
        %v1259 = vmax.f32 %v1195, 0.0
        %v1260 = vmax.f32 %v1196, 0.0
        %v1261 = vmax.f32 %v1197, 0.0
        %v1262 = vmax.f32 %v1198, 0.0
        %v1263 = vmax.f32 %v1199, 0.0
        %v1264 = vmax.f32 %v1200, 0.0
        %v1265 = vmax.f32 %v1201, 0.0
        %v1266 = vmax.f32 %v1202, 0.0
        %v1267 = vmax.f32 %v1203, 0.0
        %v1268 = vmax.f32 %v1204, 0.0
        %v1269 = vpack.c.bf16 %v1206, %v1205
        %v1270 = vpack.c.bf16 %v1208, %v1207
        %v1271 = vpack.c.bf16 %v1210, %v1209
        %v1272 = vpack.c.bf16 %v1212, %v1211
        %v1273 = vpack.c.bf16 %v1214, %v1213
        %v1274 = vpack.c.bf16 %v1216, %v1215
        %v1275 = vpack.c.bf16 %v1218, %v1217
        %v1276 = vpack.c.bf16 %v1220, %v1219
        %v1277 = vpack.c.bf16 %v1222, %v1221
        %v1278 = vpack.c.bf16 %v1224, %v1223
        %v1279 = vpack.c.bf16 %v1226, %v1225
        %v1280 = vpack.c.bf16 %v1228, %v1227
        %v1281 = vpack.c.bf16 %v1230, %v1229
        %v1282 = vpack.c.bf16 %v1232, %v1231
        %v1283 = vpack.c.bf16 %v1234, %v1233
        %v1284 = vpack.c.bf16 %v1236, %v1235
        %v1285 = vpack.c.bf16 %v1238, %v1237
        %v1286 = vpack.c.bf16 %v1240, %v1239
        %v1287 = vpack.c.bf16 %v1242, %v1241
        %v1288 = vpack.c.bf16 %v1244, %v1243
        %v1289 = vpack.c.bf16 %v1246, %v1245
        %v1290 = vpack.c.bf16 %v1248, %v1247
        %v1291 = vpack.c.bf16 %v1250, %v1249
        %v1292 = vpack.c.bf16 %v1252, %v1251
        %v1293 = vpack.c.bf16 %v1254, %v1253
        %v1294 = vpack.c.bf16 %v1256, %v1255
        %v1295 = vpack.c.bf16 %v1258, %v1257
        %v1296 = vpack.c.bf16 %v1260, %v1259
        %v1297 = vpack.c.bf16 %v1262, %v1261
        %v1298 = vpack.c.bf16 %v1264, %v1263
        %v1299 = vpack.c.bf16 %v1266, %v1265
        %v1300 = vpack.c.bf16 %v1268, %v1267
        %v1333 = vunpack.c.l.b16 %v1269
        %v1334 = vunpack.c.h.b16 %v1269
        %v1335 = vunpack.c.l.b16 %v1270
        %v1336 = vunpack.c.h.b16 %v1270
        %v1337 = vunpack.c.l.b16 %v1271
        %v1338 = vunpack.c.h.b16 %v1271
        %v1339 = vunpack.c.l.b16 %v1272
        %v1340 = vunpack.c.h.b16 %v1272
        %v1341 = vunpack.c.l.b16 %v1273
        %v1342 = vunpack.c.h.b16 %v1273
        %v1343 = vunpack.c.l.b16 %v1274
        %v1344 = vunpack.c.h.b16 %v1274
        %v1345 = vunpack.c.l.b16 %v1275
        %v1346 = vunpack.c.h.b16 %v1275
        %v1347 = vunpack.c.l.b16 %v1276
        %v1348 = vunpack.c.h.b16 %v1276
        %v1349 = vunpack.c.l.b16 %v1277
        %v1350 = vunpack.c.h.b16 %v1277
        %v1351 = vunpack.c.l.b16 %v1278
        %v1352 = vunpack.c.h.b16 %v1278
        %v1353 = vunpack.c.l.b16 %v1279
        %v1354 = vunpack.c.h.b16 %v1279
        %v1355 = vunpack.c.l.b16 %v1280
        %v1356 = vunpack.c.h.b16 %v1280
        %v1357 = vunpack.c.l.b16 %v1281
        %v1358 = vunpack.c.h.b16 %v1281
        %v1359 = vunpack.c.l.b16 %v1282
        %v1360 = vunpack.c.h.b16 %v1282
        %v1361 = vunpack.c.l.b16 %v1283
        %v1362 = vunpack.c.h.b16 %v1283
        %v1363 = vunpack.c.l.b16 %v1284
        %v1364 = vunpack.c.h.b16 %v1284
        %v1365 = vunpack.c.l.b16 %v1285
        %v1366 = vunpack.c.h.b16 %v1285
        %v1367 = vunpack.c.l.b16 %v1286
        %v1368 = vunpack.c.h.b16 %v1286
        %v1369 = vunpack.c.l.b16 %v1287
        %v1370 = vunpack.c.h.b16 %v1287
        %v1371 = vunpack.c.l.b16 %v1288
        %v1372 = vunpack.c.h.b16 %v1288
        %v1373 = vunpack.c.l.b16 %v1289
        %v1374 = vunpack.c.h.b16 %v1289
        %v1375 = vunpack.c.l.b16 %v1290
        %v1376 = vunpack.c.h.b16 %v1290
        %v1377 = vunpack.c.l.b16 %v1291
        %v1378 = vunpack.c.h.b16 %v1291
        %v1379 = vunpack.c.l.b16 %v1292
        %v1380 = vunpack.c.h.b16 %v1292
        %v1381 = vunpack.c.l.b16 %v1293
        %v1382 = vunpack.c.h.b16 %v1293
        %v1383 = vunpack.c.l.b16 %v1294
        %v1384 = vunpack.c.h.b16 %v1294
        %v1385 = vunpack.c.l.b16 %v1295
        %v1386 = vunpack.c.h.b16 %v1295
        %v1387 = vunpack.c.l.b16 %v1296
        %v1388 = vunpack.c.h.b16 %v1296
        %v1389 = vunpack.c.l.b16 %v1297
        %v1390 = vunpack.c.h.b16 %v1297
        %v1391 = vunpack.c.l.b16 %v1298
        %v1392 = vunpack.c.h.b16 %v1298
        %v1393 = vunpack.c.l.b16 %v1299
        %v1394 = vunpack.c.h.b16 %v1299
        %v1395 = vunpack.c.l.b16 %v1300
        %v1396 = vunpack.c.h.b16 %v1300
        %v1397 = vpack.c.b16 %v1333, %v1333
        %v1398 = vpack.c.b16 %v1334, %v1334
        %v1399 = vpack.c.b16 %v1335, %v1335
        %v1400 = vpack.c.b16 %v1336, %v1336
        %v1401 = vpack.c.b16 %v1337, %v1337
        %v1402 = vpack.c.b16 %v1338, %v1338
        %v1403 = vpack.c.b16 %v1339, %v1339
        %v1404 = vpack.c.b16 %v1340, %v1340
        %v1405 = vpack.c.b16 %v1341, %v1341
        %v1406 = vpack.c.b16 %v1342, %v1342
        %v1407 = vpack.c.b16 %v1343, %v1343
        %v1408 = vpack.c.b16 %v1344, %v1344
        %v1409 = vpack.c.b16 %v1345, %v1345
        %v1410 = vpack.c.b16 %v1346, %v1346
        %v1411 = vpack.c.b16 %v1347, %v1347
        %v1412 = vpack.c.b16 %v1348, %v1348
        %v1413 = vpack.c.b16 %v1349, %v1349
        %v1414 = vpack.c.b16 %v1350, %v1350
        %v1415 = vpack.c.b16 %v1351, %v1351
        %v1416 = vpack.c.b16 %v1352, %v1352
        %v1417 = vpack.c.b16 %v1353, %v1353
        %v1418 = vpack.c.b16 %v1354, %v1354
        %v1419 = vpack.c.b16 %v1355, %v1355
        %v1420 = vpack.c.b16 %v1356, %v1356
        %v1421 = vpack.c.b16 %v1357, %v1357
        %v1422 = vpack.c.b16 %v1358, %v1358
        %v1423 = vpack.c.b16 %v1359, %v1359
        %v1424 = vpack.c.b16 %v1360, %v1360
        %v1425 = vpack.c.b16 %v1361, %v1361
        %v1426 = vpack.c.b16 %v1362, %v1362
        %v1427 = vpack.c.b16 %v1363, %v1363
        %v1428 = vpack.c.b16 %v1364, %v1364
        %v1429 = vpack.c.b16 %v1365, %v1365
        %v1430 = vpack.c.b16 %v1366, %v1366
        %v1431 = vpack.c.b16 %v1367, %v1367
        %v1432 = vpack.c.b16 %v1368, %v1368
        %v1433 = vpack.c.b16 %v1369, %v1369
        %v1434 = vpack.c.b16 %v1370, %v1370
        %v1435 = vpack.c.b16 %v1371, %v1371
        %v1436 = vpack.c.b16 %v1372, %v1372
        %v1437 = vpack.c.b16 %v1373, %v1373
        %v1438 = vpack.c.b16 %v1374, %v1374
        %v1439 = vpack.c.b16 %v1375, %v1375
        %v1440 = vpack.c.b16 %v1376, %v1376
        %v1441 = vpack.c.b16 %v1377, %v1377
        %v1442 = vpack.c.b16 %v1378, %v1378
        %v1443 = vpack.c.b16 %v1379, %v1379
        %v1444 = vpack.c.b16 %v1380, %v1380
        %v1445 = vpack.c.b16 %v1381, %v1381
        %v1446 = vpack.c.b16 %v1382, %v1382
        %v1447 = vpack.c.b16 %v1383, %v1383
        %v1448 = vpack.c.b16 %v1384, %v1384
        %v1449 = vpack.c.b16 %v1385, %v1385
        %v1450 = vpack.c.b16 %v1386, %v1386
        %v1451 = vpack.c.b16 %v1387, %v1387
        %v1452 = vpack.c.b16 %v1388, %v1388
        %v1453 = vpack.c.b16 %v1389, %v1389
        %v1454 = vpack.c.b16 %v1390, %v1390
        %v1455 = vpack.c.b16 %v1391, %v1391
        %v1456 = vpack.c.b16 %v1392, %v1392
        %v1457 = vpack.c.b16 %v1393, %v1393
        %v1458 = vpack.c.b16 %v1394, %v1394
        %v1459 = vpack.c.b16 %v1395, %v1395
        %v1460 = vpack.c.b16 %v1396, %v1396
        %vm1525 = vcmask 519168
        %1526 = vst.msk [vmem:[%s242] sm:$0xf] %vm1525, %v1397
        %1527 = vst.msk [vmem:[%s242 + $0x4] sm:$0xf] %vm1525, %v1398
        %1528 = vst.msk [vmem:[%s242 + $0x8] sm:$0xf] %vm1525, %v1399
        %1529 = vst.msk [vmem:[%s242 + $0xc] sm:$0xf] %vm1525, %v1400
        %1530 = vst.msk [vmem:[%s242 + $0x10] sm:$0xf] %vm1525, %v1401
        %1531 = vst.msk [vmem:[%s242 + $0x14] sm:$0xf] %vm1525, %v1402
        %1532 = vst.msk [vmem:[%s242 + $0x18] sm:$0xf] %vm1525, %v1403
        %1533 = vst.msk [vmem:[%s242 + $0x1c] sm:$0xf] %vm1525, %v1404
        %1534 = vst.msk [vmem:[%s242 + $0x20] sm:$0xf] %vm1525, %v1405
        %1535 = vst.msk [vmem:[%s242 + $0x24] sm:$0xf] %vm1525, %v1406
        %1536 = vst.msk [vmem:[%s242 + $0x28] sm:$0xf] %vm1525, %v1407
        %1537 = vst.msk [vmem:[%s242 + $0x2c] sm:$0xf] %vm1525, %v1408
        %1538 = vst.msk [vmem:[%s242 + $0x30] sm:$0xf] %vm1525, %v1409
        %1539 = vst.msk [vmem:[%s242 + $0x34] sm:$0xf] %vm1525, %v1410
        %1540 = vst.msk [vmem:[%s242 + $0x38] sm:$0xf] %vm1525, %v1411
        %1541 = vst.msk [vmem:[%s242 + $0x3c] sm:$0xf] %vm1525, %v1412
        %1542 = vst.msk [vmem:[%s242 + $0x40] sm:$0xf] %vm1525, %v1413
        %1543 = vst.msk [vmem:[%s242 + $0x44] sm:$0xf] %vm1525, %v1414
        %1544 = vst.msk [vmem:[%s242 + $0x48] sm:$0xf] %vm1525, %v1415
        %1545 = vst.msk [vmem:[%s242 + $0x4c] sm:$0xf] %vm1525, %v1416
        %1546 = vst.msk [vmem:[%s242 + $0x50] sm:$0xf] %vm1525, %v1417
        %1547 = vst.msk [vmem:[%s242 + $0x54] sm:$0xf] %vm1525, %v1418
        %1548 = vst.msk [vmem:[%s242 + $0x58] sm:$0xf] %vm1525, %v1419
        %1549 = vst.msk [vmem:[%s242 + $0x5c] sm:$0xf] %vm1525, %v1420
        %1550 = vst.msk [vmem:[%s242 + $0x60] sm:$0xf] %vm1525, %v1421
        %1551 = vst.msk [vmem:[%s242 + $0x64] sm:$0xf] %vm1525, %v1422
        %1552 = vst.msk [vmem:[%s242 + $0x68] sm:$0xf] %vm1525, %v1423
        %1553 = vst.msk [vmem:[%s242 + $0x6c] sm:$0xf] %vm1525, %v1424
        %1554 = vst.msk [vmem:[%s242 + $0x70] sm:$0xf] %vm1525, %v1425
        %1555 = vst.msk [vmem:[%s242 + $0x74] sm:$0xf] %vm1525, %v1426
        %1556 = vst.msk [vmem:[%s242 + $0x78] sm:$0xf] %vm1525, %v1427
        %1557 = vst.msk [vmem:[%s242 + $0x7c] sm:$0xf] %vm1525, %v1428
        %1558 = vst.msk [vmem:[%s242 + $0x80] sm:$0xf] %vm1525, %v1429
        %1559 = vst.msk [vmem:[%s242 + $0x84] sm:$0xf] %vm1525, %v1430
        %1560 = vst.msk [vmem:[%s242 + $0x88] sm:$0xf] %vm1525, %v1431
        %1561 = vst.msk [vmem:[%s242 + $0x8c] sm:$0xf] %vm1525, %v1432
        %1562 = vst.msk [vmem:[%s242 + $0x90] sm:$0xf] %vm1525, %v1433
        %1563 = vst.msk [vmem:[%s242 + $0x94] sm:$0xf] %vm1525, %v1434
        %1564 = vst.msk [vmem:[%s242 + $0x98] sm:$0xf] %vm1525, %v1435
        %1565 = vst.msk [vmem:[%s242 + $0x9c] sm:$0xf] %vm1525, %v1436
        %1566 = vst.msk [vmem:[%s242 + $0xa0] sm:$0xf] %vm1525, %v1437
        %1567 = vst.msk [vmem:[%s242 + $0xa4] sm:$0xf] %vm1525, %v1438
        %1568 = vst.msk [vmem:[%s242 + $0xa8] sm:$0xf] %vm1525, %v1439
        %1569 = vst.msk [vmem:[%s242 + $0xac] sm:$0xf] %vm1525, %v1440
        %1570 = vst.msk [vmem:[%s242 + $0xb0] sm:$0xf] %vm1525, %v1441
        %1571 = vst.msk [vmem:[%s242 + $0xb4] sm:$0xf] %vm1525, %v1442
        %1572 = vst.msk [vmem:[%s242 + $0xb8] sm:$0xf] %vm1525, %v1443
        %1573 = vst.msk [vmem:[%s242 + $0xbc] sm:$0xf] %vm1525, %v1444
        %1574 = vst.msk [vmem:[%s242 + $0xc0] sm:$0xf] %vm1525, %v1445
        %1575 = vst.msk [vmem:[%s242 + $0xc4] sm:$0xf] %vm1525, %v1446
        %1576 = vst.msk [vmem:[%s242 + $0xc8] sm:$0xf] %vm1525, %v1447
        %1577 = vst.msk [vmem:[%s242 + $0xcc] sm:$0xf] %vm1525, %v1448
        %1578 = vst.msk [vmem:[%s242 + $0xd0] sm:$0xf] %vm1525, %v1449
        %1579 = vst.msk [vmem:[%s242 + $0xd4] sm:$0xf] %vm1525, %v1450
        %1580 = vst.msk [vmem:[%s242 + $0xd8] sm:$0xf] %vm1525, %v1451
        %1581 = vst.msk [vmem:[%s242 + $0xdc] sm:$0xf] %vm1525, %v1452
        %1582 = vst.msk [vmem:[%s242 + $0xe0] sm:$0xf] %vm1525, %v1453
        %1583 = vst.msk [vmem:[%s242 + $0xe4] sm:$0xf] %vm1525, %v1454
        %1584 = vst.msk [vmem:[%s242 + $0xe8] sm:$0xf] %vm1525, %v1455
        %1585 = vst.msk [vmem:[%s242 + $0xec] sm:$0xf] %vm1525, %v1456
        %1586 = vst.msk [vmem:[%s242 + $0xf0] sm:$0xf] %vm1525, %v1457
        %1587 = vst.msk [vmem:[%s242 + $0xf4] sm:$0xf] %vm1525, %v1458
        %1588 = vst.msk [vmem:[%s242 + $0xf8] sm:$0xf] %vm1525, %v1459
        %1589 = vst.msk [vmem:[%s242 + $0xfc] sm:$0xf] %vm1525, %v1460
        %s1590 = sand.u32 %s144, 1
        %s1591 = scalar_lea.sflag [#allocation3], %s1590
        %s1592 = sand.u32 %s144, 1
        %s1593 = smul.addr %s1592, 256
        %s1594 = scalar_lea.vmem [#allocation2], %s1593
        // Predicated region
        $region37: #{stem_conv.1} parent=35 // pred_check
          %p1595 = pneg %p154
        $region38: #{stem_conv.1} parent=35 // pred_check_branch
          %1597 = sbr.rel (%p1595) target = $region40
        $region39: #{stem_conv.1} parent=35 // pred_region
          %s1598 = smul.u32 64, %s22
          %s1600 = ssub.s32 4096, 4096
          %1601 = vsyncadd %s1591, %s1600
          %s1602 = sadd.s32 %s23, %s1598
          %s1603 = smul.addr %s1602, 64
          %s1604 = scalar_lea.hbm %s4, %s1603
          %s1605 = sshll.u32 %s1594, 4
          %s1606 = int_to_ptr.vmem [resolvable:$true] %s1605
          %1611 = dma.vmem_to_hbm [thread:$0]  %s1606, 4096, %s1604, %s1591, 64, 64, 4
        $region40: #{stem_conv.1} parent=35 // pred_fallthru
          _
      $region36: #{stem_conv.1} parent=5 // pred_fallthru
        _
      %p1612 = scmp.le.s32.totalorder 2, %s13
      // Predicated region
      $region41: #{stem_conv.1} parent=5 // pred_check
        %p1613 = pneg %p1612
      $region42: #{stem_conv.1} parent=5 // pred_check_branch
        %1615 = sbr.rel (%p1613) target = $region44
      $region43: #{stem_conv.1} parent=5 // pred_region
        %s1616 = ssub.s32 %s13, 2
        // Predicated region
        $region45: #{stem_conv.1} parent=43 // pred_check
          %p1617 = pneg %p160
        $region46: #{stem_conv.1} parent=43 // pred_check_branch
          %1619 = sbr.rel (%p1617) target = $region48
        $region47: #{stem_conv.1} parent=43 // pred_region
          %s1620 = sand.u32 %s145, 1
          %s1621 = scalar_lea.sflag [#allocation3], %s1620
          %s1622 = sand.u32 %s145, 1
          %s1623 = smul.addr %s1622, 256
          %s1624 = scalar_lea.vmem [#allocation2], %s1623
          %1625 = dma.done %s1621, 4096
        $region48: #{stem_conv.1} parent=43 // pred_fallthru
          _
      $region44: #{stem_conv.1} parent=5 // pred_fallthru
        _
    $region6: #{stem_conv.1} parent=1 // loop_footer
      %s17 = sadd.s32 1, %s13
    $region7: #{stem_conv.1} parent=1 // loop_footer_branch
      %12 = sbr.rel target = $region3
    $region8: #{stem_conv.1} parent=1 // loop_exit
      _
    %1626 = vsyncpa [#allocation3], 1
    %s1627 = scalar_lea.sflag [#allocation3], 1
    %1628 = vsyncpa %s1627, 1

</llo_original>
